<compile_context>
chip_gen: v5e
topology: v5e:2x2
jax: 0.10.0
libtpu: 0.0.40
codegen_flags: <defaults>
</compile_context>

<pallas_src>
import numpy as np
import jax
import jax.numpy as jnp
from jax import lax
from jax.experimental import pallas as pl
from jax.experimental.pallas import tpu as pltpu

_NEG_SLOPE = 0.01  # PyTorch F.leaky_relu default negative_slope


def _leaky(x):
    return jnp.where(x >= 0.0, x, _NEG_SLOPE * x)


# ---------------- fused encoder kernel (all layers, all stages) ---------------------
def _make_encoder_kernel(num_layers, layer_dims):
    """Kernel running every EdgeNodeFusion layer with fully VMEM-resident state."""

    def kernel(*refs):
        edge_ref, node_ref, sel_ref, asrc_ref, adstT_ref = refs[:5]
        slab_refs = refs[5:5 + 2 * num_layers]
        edge_out_ref, node_out_ref = refs[5 + 2 * num_layers:]

        e_feat = edge_ref[...]                         # [E, e_in]  deep-gravity path
        n_feat = node_ref[...]                         # [N, n_in]  GCN path
        # 0/1 selectors stored bf16 in HBM (exact); cast once, reused by every layer.
        sel = sel_ref[...].astype(jnp.float32)         # [2E, N]  rows = [ti ; tj]
        asrc = asrc_ref[...].astype(jnp.float32)       # [E, N]   src one-hots
        adstT = adstT_ref[...].astype(jnp.float32)     # [N, E]   dst one-hots (masked)

        n_nodes = n_feat.shape[0]
        n_pairs = e_feat.shape[0]
        ri = lax.broadcasted_iota(jnp.int32, (n_nodes, n_nodes), 0)
        ci = lax.broadcasted_iota(jnp.int32, (n_nodes, n_nodes), 1)
        eye = (ri == ci).astype(jnp.float32)

        # L <= 2 here: keep the layer loop unrolled (fori_loop only pays off deep).
        for l in range(num_layers):
            e_in, e_out, n_in, n_out = layer_dims[l]
            eslab = slab_refs[2 * l]                   # [e_in+3, e_out]
            nslab = slab_refs[2 * l + 1]               # [n_in+1, n_out]
            dgw = eslab[0:e_in, :]
            dgb = eslab[e_in:e_in + 1, :]
            catw = eslab[e_in + 1:e_in + 2, :]
            catb = eslab[e_in + 2:e_in + 3, :]
            gcnw = nslab[0:n_in, :]
            gcnb = nslab[n_in:n_in + 1, :]

            # 1) deep-gravity Linear + LeakyReLU
            y = _leaky(jnp.dot(e_feat, dgw, preferred_element_type=jnp.float32) + dgb)
            # TODO(synk): F.dropout is stochastic; dropout_rate=0.0 -> identity only.

            # 2) AdaptiveAvgPool1d(1) over features -> per-edge GCN edge weight
            ew = jnp.mean(y, axis=-1, keepdims=True)               # [E, 1] (VMEM only)

            # 3) weighted undirected adjacency + self loops, one incidence matmul:
            #    S[dst, src] = ew for selected pairs; adj = S + S.T + I (no scatter).
            # TODO(synk): the [E,1] lane broadcast of ew could become a [1,E] sublane
            #             broadcast on adstT, but that needs a sublane->lane move of ew.
            s_mat = jnp.dot(adstT, asrc * ew, preferred_element_type=jnp.float32)
            adj = s_mat + s_mat.T + eye
            # TODO(synk): torch_geometric coalesce (reduce='add') assumed trivial
            #             (unique i<j input pairs); duplicates would be summed anyway.

            # 4) GCNConv symmetric norm D^-1/2 A D^-1/2 (self-loops => deg >= 1)
            dr = lax.rsqrt(jnp.sum(adj, axis=1, keepdims=True))    # [N, 1]
            dc = lax.rsqrt(jnp.sum(adj, axis=0, keepdims=True))    # [1, N]
            a_hat = adj * dr * dc

            xw = jnp.dot(n_feat, gcnw, preferred_element_type=jnp.float32)
            x = _leaky(jnp.dot(a_hat, xw, preferred_element_type=jnp.float32) + gcnb)

            # 5) sigmoid(x @ x.T) restricted to strict-upper-triangle pairs, one fused
            #    gather matmul: [ti;tj] @ x, then sim[p] = sigmoid(<x[i_p], x[j_p]>).
            g = jnp.dot(sel, x, preferred_element_type=jnp.float32)     # [2E, n_out]
            s = jax.nn.sigmoid(
                jnp.sum(g[:n_pairs] * g[n_pairs:], axis=-1, keepdims=True))  # [E, 1]

            # 6) cat_ln (Linear(1->H)) as a VPU broadcast + fused residual gate
            e_feat = y * (s * catw + catb + 1.0)                    # == cat_ln(s)*y + y
            n_feat = x

        edge_out_ref[...] = e_feat
        node_out_ref[...] = n_feat

    return kernel


# ---------------- weight packing (2 slabs per layer instead of 6 args) --------------
def _pack_params(params):
    slabs, layer_dims = [], []
    for layer in params:
        dg_w = jnp.asarray(layer["dg_w"], jnp.float32)
        gcn_w = jnp.asarray(layer["gcn_w"], jnp.float32)
        dg_b = jnp.reshape(jnp.asarray(layer["dg_b"], jnp.float32), (1, -1))
        gcn_b = jnp.reshape(jnp.asarray(layer["gcn_b"], jnp.float32), (1, -1))
        cat_w = jnp.reshape(jnp.asarray(layer["cat_w"], jnp.float32), (1, -1))
        cat_b = jnp.reshape(jnp.asarray(layer["cat_b"], jnp.float32), (1, -1))
        slabs.append(jnp.concatenate([dg_w, dg_b, cat_w, cat_b], axis=0))
        slabs.append(jnp.concatenate([gcn_w, gcn_b], axis=0))
        layer_dims.append((dg_w.shape[0], dg_w.shape[1],
                           gcn_w.shape[0], gcn_w.shape[1]))
    return slabs, tuple(layer_dims)


# ---------------- VMEM budget (explicit, padded to (8,128) tiles) -------------------
def _padded_bytes(shape, dtype):
    item = np.dtype(dtype).itemsize
    sub = 8 * max(1, 4 // item)                      # bf16 packs 16 sublanes per vreg
    if len(shape) == 0:
        return 4096
    if len(shape) == 1:
        return max(int(np.ceil(shape[0] / 128)) * 128 * item, 4096)
    lead = int(np.prod(shape[:-2])) if len(shape) > 2 else 1
    rows = int(np.ceil(shape[-2] / sub)) * sub
    cols = int(np.ceil(shape[-1] / 128)) * 128
    return lead * rows * cols * item


def _vmem_limit_bytes(inputs, out_shapes):
    total = sum(_padded_bytes(a.shape, a.dtype) for a in inputs)
    total += sum(_padded_bytes(s.shape, s.dtype) for s in out_shapes)
    # ~4x headroom for in-kernel temporaries (y, gathered pairs, adjacency, casts).
    return int(min(100 * 1024 * 1024, max(16 * 1024 * 1024, 4 * total)))


# ---------------- single fused pallas_call for the whole encoder --------------------
def fused_encoder(edge_features, node_features, params, structure):
    sel_stack, adj_src, adj_dstT = structure
    n_pairs = edge_features.shape[0]
    n_nodes = node_features.shape[0]
    slabs, layer_dims = _pack_params(params)
    e_out = layer_dims[-1][1]
    n_out = layer_dims[-1][3]
    out_shapes = (jax.ShapeDtypeStruct((n_pairs, e_out), jnp.float32),
                  jax.ShapeDtypeStruct((n_nodes, n_out), jnp.float32))
    inputs = [edge_features, node_features, sel_stack, adj_src, adj_dstT, *slabs]
    kernel = _make_encoder_kernel(len(params), layer_dims)
    return pl.pallas_call(
        kernel,
        out_shape=out_shapes,
        in_specs=[pl.BlockSpec(memory_space=pltpu.MemorySpace.VMEM)] * len(inputs),
        out_specs=(pl.BlockSpec(memory_space=pltpu.MemorySpace.VMEM),
                   pl.BlockSpec(memory_space=pltpu.MemorySpace.VMEM)),
        compiler_params=pltpu.CompilerParams(
            vmem_limit_bytes=_vmem_limit_bytes(inputs, out_shapes)),
    )(*inputs)


# ---------------- static structure (host-side numpy, no runtime cost) ---------------
def build_structure(n_nodes, n_pairs, interaction_index, adjacency_mask):
    mask = np.asarray(adjacency_mask).astype(bool)
    sel_idx = np.nonzero(mask)[0]
    ei = np.asarray(interaction_index)
    src, dst = ei[0], ei[1]
    assert src.shape[0] == sel_idx.shape[0], "edge_index / mask length mismatch"

    iu = np.triu_indices(n_nodes, k=1)               # row-major == masked_select order
    assert iu[0].shape[0] == n_pairs
    ti = np.zeros((n_pairs, n_nodes), np.float32)
    tj = np.zeros((n_pairs, n_nodes), np.float32)
    ti[np.arange(n_pairs), iu[0]] = 1.0
    tj[np.arange(n_pairs), iu[1]] = 1.0
    sel_stack = np.concatenate([ti, tj], axis=0)     # [2E, N] fused pair-gather LHS

    # Adjacency scatter operands: S[dst, src] += ew for selected pairs.
    # When interaction_index follows the row-major triu ordering (this module's case),
    # they are exactly ti and (tj * mask).T, so no extra matrices are materialized.
    triu_order = (np.array_equal(iu[0][sel_idx], src)
                  and np.array_equal(iu[1][sel_idx], dst))
    if triu_order:
        adj_src = ti
        adj_dstT = (tj * mask[:, None].astype(np.float32)).T
    else:
        adj_src = np.zeros((n_pairs, n_nodes), np.float32)
        adj_dstT = np.zeros((n_nodes, n_pairs), np.float32)
        adj_src[sel_idx, src] = 1.0
        adj_dstT[dst, sel_idx] = 1.0

    # 0/1 selectors are exact in bf16; halves DMA/VMEM for the largest arrays.
    return (jnp.asarray(sel_stack, dtype=jnp.bfloat16),
            jnp.asarray(adj_src, dtype=jnp.bfloat16),
            jnp.asarray(adj_dstT, dtype=jnp.bfloat16))


# ---------------- module-level wrappers ---------------------------------------------
def edge_node_fusion(node_attr, edge_index, edge_attr, layer, adjacency_mask):
    """Single EdgeNodeFusion.forward (edge_mask=None path)."""
    # TODO(synk): edge_mask selection branch (edge_mask is not None) not implemented.
    structure = build_structure(node_attr.shape[0], edge_attr.shape[0],
                                edge_index, adjacency_mask)
    return fused_encoder(edge_attr, node_attr, [layer], structure)


def encoder_forward(node_input_x, interaction_index, edge_attr,
                    interaction_indices_lists, params):
    # NOTE: reproduces the PyTorch source exactly, including the swap below.
    edge_features, node_features = node_input_x, edge_attr
    structure = build_structure(node_features.shape[0], edge_features.shape[0],
                                interaction_index, interaction_indices_lists[0])
    return fused_encoder(edge_features, node_features, params, structure)


# ---------------- parameters (deterministic, synthetic) -----------------------------
def init_encoder_params(key, node_input_dim, node_hidden_dims,
                        edge_input_dim, edge_hidden_dims):
    params = []
    for i in range(len(node_hidden_dims)):
        e_in = edge_input_dim if i == 0 else edge_hidden_dims[i - 1]
        n_in = node_input_dim if i == 0 else node_hidden_dims[i - 1]
        e_out, n_out = edge_hidden_dims[i], node_hidden_dims[i]
        key, k1, k2, k3, k4, k5, k6 = jax.random.split(key, 7)
        params.append(dict(
            dg_w=jax.random.uniform(k1, (e_in, e_out), jnp.float32, -1.0, 1.0)
                 / np.sqrt(e_in),
            dg_b=jax.random.uniform(k2, (1, e_out), jnp.float32, -0.1, 0.1),
            gcn_w=jax.random.uniform(k3, (n_in, n_out), jnp.float32, -1.0, 1.0)
                  / np.sqrt(n_in),
            gcn_b=jax.random.uniform(k4, (1, n_out), jnp.float32, -0.1, 0.1),
            cat_w=jax.random.uniform(k5, (1, e_out), jnp.float32, -1.0, 1.0),
            cat_b=jax.random.uniform(k6, (1, e_out), jnp.float32, -1.0, 1.0),
        ))
    return params


# ---------------- pure-JAX reference (for correctness check only) -------------------
def _reference_forward(node_input_x, interaction_index, edge_attr,
                       interaction_indices_lists, params):
    edge_features, node_features = node_input_x, edge_attr
    n_nodes = node_features.shape[0]
    iu = np.triu_indices(n_nodes, k=1)
    mask = np.asarray(interaction_indices_lists[0]).astype(bool)
    sel = np.nonzero(mask)[0]
    ei = np.asarray(interaction_index)
    src, dst = ei[0], ei[1]
    hp = lax.Precision.HIGHEST
    for layer in params:
        y = jnp.dot(edge_features, layer["dg_w"], precision=hp) + layer["dg_b"]
        y = jnp.where(y >= 0, y, _NEG_SLOPE * y)
        ew = jnp.mean(y, axis=-1)[sel]
        adj = jnp.zeros((n_nodes, n_nodes), jnp.float32)
        adj = adj.at[dst, src].add(ew).at[src, dst].add(ew)
        adj = adj + jnp.eye(n_nodes, dtype=jnp.float32)
        deg_r = jnp.sum(adj, axis=1, keepdims=True)
        deg_c = jnp.sum(adj, axis=0, keepdims=True)
        dr = jnp.where(deg_r > 0, lax.rsqrt(deg_r), 0.0)
        dc = jnp.where(deg_c > 0, lax.rsqrt(deg_c), 0.0)
        a_hat = adj * dr * dc
        x = jnp.dot(a_hat, jnp.dot(node_features, layer["gcn_w"], precision=hp),
                    precision=hp) + layer["gcn_b"]
        x = jnp.where(x >= 0, x, _NEG_SLOPE * x)
        sim = jax.nn.sigmoid(jnp.dot(x, x.T, precision=hp))
        s = sim[iu[0], iu[1]][:, None]
        scale = s * layer["cat_w"] + layer["cat_b"]
        edge_features = y * (scale + 1.0)
        node_features = x
    return edge_features, node_features


if __name__ == "__main__":
    N_NODES = 16
    N_PAIRS = N_NODES * (N_NODES - 1) // 2        # 120 (multiple of 8 sublanes)
    NODE_IN = 8      # feature dim of `edge_attr` input  (fed to GCNConv)
    EDGE_IN = 12     # feature dim of `node_input_x`     (fed to deep-gravity Linear)
    NODE_HID = [32, 32]
    EDGE_HID = [32, 32]

    key = jax.random.PRNGKey(0)
    key, kx, ke = jax.random.split(key, 3)
    node_input_x = jax.random.normal(kx, (N_PAIRS, EDGE_IN), jnp.float32)
    edge_attr = jax.random.normal(ke, (N_NODES, NODE_IN), jnp.float32)

    iu = np.triu_indices(N_NODES, k=1)
    adjacency_mask = (np.arange(N_PAIRS) % 2 == 0)            # select every other pair
    sel = np.nonzero(adjacency_mask)[0]
    interaction_index = jnp.asarray(
        np.stack([iu[0][sel], iu[1][sel]], axis=0), dtype=jnp.int32)   # [2, E_sel]
    interaction_indices_lists = [jnp.asarray(adjacency_mask)]

    params = init_encoder_params(key, NODE_IN, NODE_HID, EDGE_IN, EDGE_HID)

    edge_out, node_out = encoder_forward(
        node_input_x, interaction_index, edge_attr,
        interaction_indices_lists, params)
    jax.block_until_ready((edge_out, node_out))

    assert edge_out.shape == (N_PAIRS, EDGE_HID[-1])
    assert node_out.shape == (N_NODES, NODE_HID[-1])
    assert bool(jnp.isfinite(edge_out).all()) and bool(jnp.isfinite(node_out).all())

    # correctness check against a pure-JAX reference of the same forward pass
    edge_ref, node_ref = _reference_forward(
        node_input_x, interaction_index, edge_attr,
        interaction_indices_lists, params)
    np.testing.assert_allclose(np.asarray(edge_out), np.asarray(edge_ref),
                               rtol=2e-3, atol=2e-3)
    np.testing.assert_allclose(np.asarray(node_out), np.asarray(node_ref),
                               rtol=2e-3, atol=2e-3)
    print("KERNEL_OK")
</pallas_src>

<mosaic_0001>
module attributes {stable_mosaic.version = 11 : i64} {
  func.func @kernel(%arg0: memref<120x12xf32, #tpu.memory_space<vmem>>, %arg1: memref<16x8xf32, #tpu.memory_space<vmem>>, %arg2: memref<240x16xbf16, #tpu.memory_space<vmem>>, %arg3: memref<120x16xbf16, #tpu.memory_space<vmem>>, %arg4: memref<16x120xbf16, #tpu.memory_space<vmem>>, %arg5: memref<15x32xf32, #tpu.memory_space<vmem>>, %arg6: memref<9x32xf32, #tpu.memory_space<vmem>>, %arg7: memref<35x32xf32, #tpu.memory_space<vmem>>, %arg8: memref<33x32xf32, #tpu.memory_space<vmem>>, %arg9: memref<120x32xf32, #tpu.memory_space<vmem>>, %arg10: memref<16x32xf32, #tpu.memory_space<vmem>>) attributes {dimension_semantics = [], scalar_prefetch = 0 : i64, scratch_operands = 0 : i64, tpu.core_type = #tpu.core_type<tc>} {
    %c0 = arith.constant 0 : index
    %c0_0 = arith.constant 0 : index
    %0 = vector.load %arg0[%c0, %c0_0] : memref<120x12xf32, #tpu.memory_space<vmem>>, vector<120x12xf32>
    %c0_1 = arith.constant 0 : index
    %c0_2 = arith.constant 0 : index
    %1 = vector.load %arg1[%c0_1, %c0_2] : memref<16x8xf32, #tpu.memory_space<vmem>>, vector<16x8xf32>
    %c0_3 = arith.constant 0 : index
    %c0_4 = arith.constant 0 : index
    %2 = vector.load %arg2[%c0_3, %c0_4] : memref<240x16xbf16, #tpu.memory_space<vmem>>, vector<240x16xbf16>
    %3 = arith.extf %2 : vector<240x16xbf16> to vector<240x16xf32>
    %c0_5 = arith.constant 0 : index
    %c0_6 = arith.constant 0 : index
    %4 = vector.load %arg3[%c0_5, %c0_6] : memref<120x16xbf16, #tpu.memory_space<vmem>>, vector<120x16xbf16>
    %5 = arith.extf %4 : vector<120x16xbf16> to vector<120x16xf32>
    %c0_7 = arith.constant 0 : index
    %c0_8 = arith.constant 0 : index
    %6 = vector.load %arg4[%c0_7, %c0_8] : memref<16x120xbf16, #tpu.memory_space<vmem>>, vector<16x120xbf16>
    %7 = arith.extf %6 : vector<16x120xbf16> to vector<16x120xf32>
    %8 = tpu.iota {dimensions = array<i32: 0>} : vector<16x16xi32>
    %9 = tpu.iota {dimensions = array<i32: 1>} : vector<16x16xi32>
    %10 = arith.cmpi eq, %8, %9 : vector<16x16xi32>
    %11 = arith.extui %10 : vector<16x16xi1> to vector<16x16xi32>
    %12 = arith.sitofp %11 : vector<16x16xi32> to vector<16x16xf32>
    %c0_9 = arith.constant 0 : index
    %c0_10 = arith.constant 0 : index
    %13 = vector.load %arg5[%c0_9, %c0_10] : memref<15x32xf32, #tpu.memory_space<vmem>>, vector<12x32xf32>
    %c12 = arith.constant 12 : index
    %c0_11 = arith.constant 0 : index
    %14 = vector.load %arg5[%c12, %c0_11] : memref<15x32xf32, #tpu.memory_space<vmem>>, vector<1x32xf32>
    %c13 = arith.constant 13 : index
    %c0_12 = arith.constant 0 : index
    %15 = vector.load %arg5[%c13, %c0_12] : memref<15x32xf32, #tpu.memory_space<vmem>>, vector<1x32xf32>
    %c14 = arith.constant 14 : index
    %c0_13 = arith.constant 0 : index
    %16 = vector.load %arg5[%c14, %c0_13] : memref<15x32xf32, #tpu.memory_space<vmem>>, vector<1x32xf32>
    %c0_14 = arith.constant 0 : index
    %c0_15 = arith.constant 0 : index
    %17 = vector.load %arg6[%c0_14, %c0_15] : memref<9x32xf32, #tpu.memory_space<vmem>>, vector<8x32xf32>
    %c8 = arith.constant 8 : index
    %c0_16 = arith.constant 0 : index
    %18 = vector.load %arg6[%c8, %c0_16] : memref<9x32xf32, #tpu.memory_space<vmem>>, vector<1x32xf32>
    %cst = arith.constant dense<0.000000e+00> : vector<120x32xf32>
    %19 = tpu.matmul %0, %13, %cst {dimension_numbers = #tpu.dot_dimension_numbers<[1], [0], [0], [1], [0, 0, 1, 1], [], []>} : vector<120x12xf32>, vector<12x32xf32>, vector<120x32xf32> -> vector<120x32xf32>
    %20 = vector.broadcast %14 : vector<1x32xf32> to vector<120x32xf32>
    %21 = arith.addf %19, %20 : vector<120x32xf32>
    %cst_17 = arith.constant 0.000000e+00 : f32
    %22 = vector.broadcast %cst_17 : f32 to vector<120x32xf32>
    %23 = arith.cmpf oge, %21, %22 : vector<120x32xf32>
    %cst_18 = arith.constant 0.00999999977 : f32
    %24 = vector.broadcast %cst_18 : f32 to vector<120x32xf32>
    %25 = arith.mulf %24, %21 : vector<120x32xf32>
    %26 = arith.select %23, %21, %25 : vector<120x32xi1>, vector<120x32xf32>
    %cst_19 = arith.constant dense<0.000000e+00> : vector<120xf32>
    %27 = vector.multi_reduction <add>, %26, %cst_19 [1] : vector<120x32xf32> to vector<120xf32>
    %28 = vector.shape_cast %27 : vector<120xf32> to vector<120x1xf32>
    %cst_20 = arith.constant 3.200000e+01 : f32
    %29 = vector.broadcast %cst_20 : f32 to vector<120x1xf32>
    %30 = arith.divf %28, %29 : vector<120x1xf32>
    %31 = vector.broadcast %30 : vector<120x1xf32> to vector<120x16xf32>
    %32 = arith.mulf %5, %31 : vector<120x16xf32>
    %cst_21 = arith.constant dense<0.000000e+00> : vector<16x16xf32>
    %33 = tpu.matmul %7, %32, %cst_21 {dimension_numbers = #tpu.dot_dimension_numbers<[1], [0], [0], [1], [0, 0, 1, 1], [], []>} : vector<16x120xf32>, vector<120x16xf32>, vector<16x16xf32> -> vector<16x16xf32>
    %34 = tpu.transpose %33, [1, 0] : vector<16x16xf32> -> vector<16x16xf32>
    %35 = arith.addf %33, %34 : vector<16x16xf32>
    %36 = arith.addf %35, %12 : vector<16x16xf32>
    %cst_22 = arith.constant dense<0.000000e+00> : vector<16xf32>
    %37 = vector.multi_reduction <add>, %36, %cst_22 [1] : vector<16x16xf32> to vector<16xf32>
    %38 = vector.shape_cast %37 : vector<16xf32> to vector<16x1xf32>
    %39 = math.rsqrt %38 : vector<16x1xf32>
    %cst_23 = arith.constant dense<0.000000e+00> : vector<16xf32>
    %40 = vector.multi_reduction <add>, %36, %cst_23 [0] : vector<16x16xf32> to vector<16xf32>
    %41 = vector.shape_cast %40 : vector<16xf32> to vector<1x16xf32>
    %42 = math.rsqrt %41 : vector<1x16xf32>
    %43 = vector.broadcast %39 : vector<16x1xf32> to vector<16x16xf32>
    %44 = arith.mulf %36, %43 : vector<16x16xf32>
    %45 = vector.broadcast %42 : vector<1x16xf32> to vector<16x16xf32>
    %46 = arith.mulf %44, %45 : vector<16x16xf32>
    %cst_24 = arith.constant dense<0.000000e+00> : vector<16x32xf32>
    %47 = tpu.matmul %1, %17, %cst_24 {dimension_numbers = #tpu.dot_dimension_numbers<[1], [0], [0], [1], [0, 0, 1, 1], [], []>} : vector<16x8xf32>, vector<8x32xf32>, vector<16x32xf32> -> vector<16x32xf32>
    %cst_25 = arith.constant dense<0.000000e+00> : vector<16x32xf32>
    %48 = tpu.matmul %46, %47, %cst_25 {dimension_numbers = #tpu.dot_dimension_numbers<[1], [0], [0], [1], [0, 0, 1, 1], [], []>} : vector<16x16xf32>, vector<16x32xf32>, vector<16x32xf32> -> vector<16x32xf32>
    %49 = vector.broadcast %18 : vector<1x32xf32> to vector<16x32xf32>
    %50 = arith.addf %48, %49 : vector<16x32xf32>
    %cst_26 = arith.constant 0.000000e+00 : f32
    %51 = vector.broadcast %cst_26 : f32 to vector<16x32xf32>
    %52 = arith.cmpf oge, %50, %51 : vector<16x32xf32>
    %cst_27 = arith.constant 0.00999999977 : f32
    %53 = vector.broadcast %cst_27 : f32 to vector<16x32xf32>
    %54 = arith.mulf %53, %50 : vector<16x32xf32>
    %55 = arith.select %52, %50, %54 : vector<16x32xi1>, vector<16x32xf32>
    %cst_28 = arith.constant dense<0.000000e+00> : vector<240x32xf32>
    %56 = tpu.matmul %3, %55, %cst_28 {dimension_numbers = #tpu.dot_dimension_numbers<[1], [0], [0], [1], [0, 0, 1, 1], [], []>} : vector<240x16xf32>, vector<16x32xf32>, vector<240x32xf32> -> vector<240x32xf32>
    %57 = vector.extract_strided_slice %56 {offsets = [0, 0], sizes = [120, 32], strides = [1, 1]} : vector<240x32xf32> to vector<120x32xf32>
    %58 = vector.extract_strided_slice %56 {offsets = [120, 0], sizes = [120, 32], strides = [1, 1]} : vector<240x32xf32> to vector<120x32xf32>
    %59 = arith.mulf %57, %58 : vector<120x32xf32>
    %cst_29 = arith.constant dense<0.000000e+00> : vector<120xf32>
    %60 = vector.multi_reduction <add>, %59, %cst_29 [1] : vector<120x32xf32> to vector<120xf32>
    %61 = vector.shape_cast %60 : vector<120xf32> to vector<120x1xf32>
    %62 = arith.negf %61 : vector<120x1xf32>
    %63 = math.exp %62 : vector<120x1xf32>
    %cst_30 = arith.constant 1.000000e+00 : f32
    %64 = vector.broadcast %cst_30 : f32 to vector<120x1xf32>
    %65 = arith.addf %64, %63 : vector<120x1xf32>
    %66 = arith.divf %64, %65 : vector<120x1xf32>
    %67 = vector.broadcast %66 : vector<120x1xf32> to vector<120x32xf32>
    %68 = vector.broadcast %15 : vector<1x32xf32> to vector<120x32xf32>
    %69 = arith.mulf %67, %68 : vector<120x32xf32>
    %70 = vector.broadcast %16 : vector<1x32xf32> to vector<120x32xf32>
    %71 = arith.addf %69, %70 : vector<120x32xf32>
    %cst_31 = arith.constant 1.000000e+00 : f32
    %72 = vector.broadcast %cst_31 : f32 to vector<120x32xf32>
    %73 = arith.addf %71, %72 : vector<120x32xf32>
    %74 = arith.mulf %26, %73 : vector<120x32xf32>
    %c0_32 = arith.constant 0 : index
    %c0_33 = arith.constant 0 : index
    %75 = vector.load %arg7[%c0_32, %c0_33] : memref<35x32xf32, #tpu.memory_space<vmem>>, vector<32x32xf32>
    %c32 = arith.constant 32 : index
    %c0_34 = arith.constant 0 : index
    %76 = vector.load %arg7[%c32, %c0_34] : memref<35x32xf32, #tpu.memory_space<vmem>>, vector<1x32xf32>
    %c33 = arith.constant 33 : index
    %c0_35 = arith.constant 0 : index
    %77 = vector.load %arg7[%c33, %c0_35] : memref<35x32xf32, #tpu.memory_space<vmem>>, vector<1x32xf32>
    %c34 = arith.constant 34 : index
    %c0_36 = arith.constant 0 : index
    %78 = vector.load %arg7[%c34, %c0_36] : memref<35x32xf32, #tpu.memory_space<vmem>>, vector<1x32xf32>
    %c0_37 = arith.constant 0 : index
    %c0_38 = arith.constant 0 : index
    %79 = vector.load %arg8[%c0_37, %c0_38] : memref<33x32xf32, #tpu.memory_space<vmem>>, vector<32x32xf32>
    %c32_39 = arith.constant 32 : index
    %c0_40 = arith.constant 0 : index
    %80 = vector.load %arg8[%c32_39, %c0_40] : memref<33x32xf32, #tpu.memory_space<vmem>>, vector<1x32xf32>
    %cst_41 = arith.constant dense<0.000000e+00> : vector<120x32xf32>
    %81 = tpu.matmul %74, %75, %cst_41 {dimension_numbers = #tpu.dot_dimension_numbers<[1], [0], [0], [1], [0, 0, 1, 1], [], []>} : vector<120x32xf32>, vector<32x32xf32>, vector<120x32xf32> -> vector<120x32xf32>
    %82 = vector.broadcast %76 : vector<1x32xf32> to vector<120x32xf32>
    %83 = arith.addf %81, %82 : vector<120x32xf32>
    %cst_42 = arith.constant 0.000000e+00 : f32
    %84 = vector.broadcast %cst_42 : f32 to vector<120x32xf32>
    %85 = arith.cmpf oge, %83, %84 : vector<120x32xf32>
    %cst_43 = arith.constant 0.00999999977 : f32
    %86 = vector.broadcast %cst_43 : f32 to vector<120x32xf32>
    %87 = arith.mulf %86, %83 : vector<120x32xf32>
    %88 = arith.select %85, %83, %87 : vector<120x32xi1>, vector<120x32xf32>
    %cst_44 = arith.constant dense<0.000000e+00> : vector<120xf32>
    %89 = vector.multi_reduction <add>, %88, %cst_44 [1] : vector<120x32xf32> to vector<120xf32>
    %90 = vector.shape_cast %89 : vector<120xf32> to vector<120x1xf32>
    %cst_45 = arith.constant 3.200000e+01 : f32
    %91 = vector.broadcast %cst_45 : f32 to vector<120x1xf32>
    %92 = arith.divf %90, %91 : vector<120x1xf32>
    %93 = vector.broadcast %92 : vector<120x1xf32> to vector<120x16xf32>
    %94 = arith.mulf %5, %93 : vector<120x16xf32>
    %cst_46 = arith.constant dense<0.000000e+00> : vector<16x16xf32>
    %95 = tpu.matmul %7, %94, %cst_46 {dimension_numbers = #tpu.dot_dimension_numbers<[1], [0], [0], [1], [0, 0, 1, 1], [], []>} : vector<16x120xf32>, vector<120x16xf32>, vector<16x16xf32> -> vector<16x16xf32>
    %96 = tpu.transpose %95, [1, 0] : vector<16x16xf32> -> vector<16x16xf32>
    %97 = arith.addf %95, %96 : vector<16x16xf32>
    %98 = arith.addf %97, %12 : vector<16x16xf32>
    %cst_47 = arith.constant dense<0.000000e+00> : vector<16xf32>
    %99 = vector.multi_reduction <add>, %98, %cst_47 [1] : vector<16x16xf32> to vector<16xf32>
    %100 = vector.shape_cast %99 : vector<16xf32> to vector<16x1xf32>
    %101 = math.rsqrt %100 : vector<16x1xf32>
    %cst_48 = arith.constant dense<0.000000e+00> : vector<16xf32>
    %102 = vector.multi_reduction <add>, %98, %cst_48 [0] : vector<16x16xf32> to vector<16xf32>
    %103 = vector.shape_cast %102 : vector<16xf32> to vector<1x16xf32>
    %104 = math.rsqrt %103 : vector<1x16xf32>
    %105 = vector.broadcast %101 : vector<16x1xf32> to vector<16x16xf32>
    %106 = arith.mulf %98, %105 : vector<16x16xf32>
    %107 = vector.broadcast %104 : vector<1x16xf32> to vector<16x16xf32>
    %108 = arith.mulf %106, %107 : vector<16x16xf32>
    %cst_49 = arith.constant dense<0.000000e+00> : vector<16x32xf32>
    %109 = tpu.matmul %55, %79, %cst_49 {dimension_numbers = #tpu.dot_dimension_numbers<[1], [0], [0], [1], [0, 0, 1, 1], [], []>} : vector<16x32xf32>, vector<32x32xf32>, vector<16x32xf32> -> vector<16x32xf32>
    %cst_50 = arith.constant dense<0.000000e+00> : vector<16x32xf32>
    %110 = tpu.matmul %108, %109, %cst_50 {dimension_numbers = #tpu.dot_dimension_numbers<[1], [0], [0], [1], [0, 0, 1, 1], [], []>} : vector<16x16xf32>, vector<16x32xf32>, vector<16x32xf32> -> vector<16x32xf32>
    %111 = vector.broadcast %80 : vector<1x32xf32> to vector<16x32xf32>
    %112 = arith.addf %110, %111 : vector<16x32xf32>
    %cst_51 = arith.constant 0.000000e+00 : f32
    %113 = vector.broadcast %cst_51 : f32 to vector<16x32xf32>
    %114 = arith.cmpf oge, %112, %113 : vector<16x32xf32>
    %cst_52 = arith.constant 0.00999999977 : f32
    %115 = vector.broadcast %cst_52 : f32 to vector<16x32xf32>
    %116 = arith.mulf %115, %112 : vector<16x32xf32>
    %117 = arith.select %114, %112, %116 : vector<16x32xi1>, vector<16x32xf32>
    %cst_53 = arith.constant dense<0.000000e+00> : vector<240x32xf32>
    %118 = tpu.matmul %3, %117, %cst_53 {dimension_numbers = #tpu.dot_dimension_numbers<[1], [0], [0], [1], [0, 0, 1, 1], [], []>} : vector<240x16xf32>, vector<16x32xf32>, vector<240x32xf32> -> vector<240x32xf32>
    %119 = vector.extract_strided_slice %118 {offsets = [0, 0], sizes = [120, 32], strides = [1, 1]} : vector<240x32xf32> to vector<120x32xf32>
    %120 = vector.extract_strided_slice %118 {offsets = [120, 0], sizes = [120, 32], strides = [1, 1]} : vector<240x32xf32> to vector<120x32xf32>
    %121 = arith.mulf %119, %120 : vector<120x32xf32>
    %cst_54 = arith.constant dense<0.000000e+00> : vector<120xf32>
    %122 = vector.multi_reduction <add>, %121, %cst_54 [1] : vector<120x32xf32> to vector<120xf32>
    %123 = vector.shape_cast %122 : vector<120xf32> to vector<120x1xf32>
    %124 = arith.negf %123 : vector<120x1xf32>
    %125 = math.exp %124 : vector<120x1xf32>
    %cst_55 = arith.constant 1.000000e+00 : f32
    %126 = vector.broadcast %cst_55 : f32 to vector<120x1xf32>
    %127 = arith.addf %126, %125 : vector<120x1xf32>
    %128 = arith.divf %126, %127 : vector<120x1xf32>
    %129 = vector.broadcast %128 : vector<120x1xf32> to vector<120x32xf32>
    %130 = vector.broadcast %77 : vector<1x32xf32> to vector<120x32xf32>
    %131 = arith.mulf %129, %130 : vector<120x32xf32>
    %132 = vector.broadcast %78 : vector<1x32xf32> to vector<120x32xf32>
    %133 = arith.addf %131, %132 : vector<120x32xf32>
    %cst_56 = arith.constant 1.000000e+00 : f32
    %134 = vector.broadcast %cst_56 : f32 to vector<120x32xf32>
    %135 = arith.addf %133, %134 : vector<120x32xf32>
    %136 = arith.mulf %88, %135 : vector<120x32xf32>
    %c0_57 = arith.constant 0 : index
    %c0_58 = arith.constant 0 : index
    %137 = vector.load %arg9[%c0_57, %c0_58] : memref<120x32xf32, #tpu.memory_space<vmem>>, vector<120x32xf32>
    tpu.vector_store %arg9[%c0_57, %c0_58], %136 {strides = array<i32>} : memref<120x32xf32, #tpu.memory_space<vmem>>, vector<120x32xf32>,
    %c0_59 = arith.constant 0 : index
    %c0_60 = arith.constant 0 : index
    %138 = vector.load %arg10[%c0_59, %c0_60] : memref<16x32xf32, #tpu.memory_space<vmem>>, vector<16x32xf32>
    tpu.vector_store %arg10[%c0_59, %c0_60], %117 {strides = array<i32>} : memref<16x32xf32, #tpu.memory_space<vmem>>, vector<16x32xf32>,
    return
  }
}

</mosaic_0001>

<llo_original>
// kernel: tpu_custom_call.1
$region0: #{tpu_custom_call.1}
  #allocation0 [shape = 'u32[]', space=smem, size = 0x4, offset = 0x4, fixed_abs, tag = 'smem constant byte address 0x4 - core index']
  #allocation1 [shape = 'u32[72,128]{1,0:T(1,128)}', space=vmem, size = 0x9000, scoped, tag = 'internal scratch']
  %s0 = inlined_call_operand.vmem [shape: f32[120,12], index: 0, kind: input, shape index: {}]
  %s1 = inlined_call_operand.vmem [shape: f32[16,8], index: 1, kind: input, shape index: {}]
  %s2 = inlined_call_operand.vmem [shape: bf16[240,16], index: 2, kind: input, shape index: {}]
  %s3 = inlined_call_operand.vmem [shape: bf16[120,16], index: 3, kind: input, shape index: {}]
  %s4 = inlined_call_operand.vmem [shape: bf16[16,120], index: 4, kind: input, shape index: {}]
  %s5 = inlined_call_operand.vmem [shape: f32[15,32], index: 5, kind: input, shape index: {}]
  %s6 = inlined_call_operand.vmem [shape: f32[9,32], index: 6, kind: input, shape index: {}]
  %s7 = inlined_call_operand.vmem [shape: f32[35,32], index: 7, kind: input, shape index: {}]
  %s8 = inlined_call_operand.vmem [shape: f32[33,32], index: 8, kind: input, shape index: {}]
  %s9 = inlined_call_operand.vmem [shape: f32[120,32], index: 9, kind: output, shape index: {0}]
  %s10 = inlined_call_operand.hbm [shape: f32[16,32], index: 10, kind: output, shape index: {1}]
  %11 = xla_tuple %s9, %s10
  %s12 = sld [smem:[#allocation0]]
  $region54: #{tpu_custom_call.1} parent=0
    _
  %s14 = ssub.s32 1, %s12
  %s15 = scalar_select 0, %s14, %s12
  $region1: #{tpu_custom_call.1} parent=0
    #allocation2 [shape = 'u8[8192]{0}', space=vmem, size = 0x2000, scoped, tag = 'output window, operand 1, single buffered']
    #allocation3 [shape = 's32[1]{0}', space=sflag, size = 0x4, scoped, tag = 'scoped memory for tpu_custom_call.1']
    %16 = vsyncpa [#allocation3], 0
    // Predicated region
    $region2: #{tpu_custom_call.1} parent=1 // pred_check
      _
    $region3: #{tpu_custom_call.1} parent=1 // pred_check_branch
      %18 = sbr.rel (0) target = $region5
    $region4: #{tpu_custom_call.1} parent=1 // pred_region
      _
    $region5: #{tpu_custom_call.1} parent=1 // pred_fallthru
      _
    // Predicated region
    $region6: #{tpu_custom_call.1} parent=1 // pred_check
      _
    $region7: #{tpu_custom_call.1} parent=1 // pred_check_branch
      %20 = sbr.rel (0) target = $region9
    $region8: #{tpu_custom_call.1} parent=1 // pred_region
      _
    $region9: #{tpu_custom_call.1} parent=1 // pred_fallthru
      _
    // Predicated region
    $region10: #{tpu_custom_call.1} parent=1 // pred_check
      _
    $region11: #{tpu_custom_call.1} parent=1 // pred_check_branch
      %22 = sbr.rel (0) target = $region13
    $region12: #{tpu_custom_call.1} parent=1 // pred_region
      _
    $region13: #{tpu_custom_call.1} parent=1 // pred_fallthru
      _
    // Predicated region
    $region14: #{tpu_custom_call.1} parent=1 // pred_check
      _
    $region15: #{tpu_custom_call.1} parent=1 // pred_check_branch
      %24 = sbr.rel (0) target = $region17
    $region16: #{tpu_custom_call.1} parent=1 // pred_region
      _
    $region17: #{tpu_custom_call.1} parent=1 // pred_fallthru
      _
    // Predicated region
    $region18: #{tpu_custom_call.1} parent=1 // pred_check
      _
    $region19: #{tpu_custom_call.1} parent=1 // pred_check_branch
      %26 = sbr.rel (0) target = $region21
    $region20: #{tpu_custom_call.1} parent=1 // pred_region
      _
    $region21: #{tpu_custom_call.1} parent=1 // pred_fallthru
      _
    // Predicated region
    $region22: #{tpu_custom_call.1} parent=1 // pred_check
      _
    $region23: #{tpu_custom_call.1} parent=1 // pred_check_branch
      %28 = sbr.rel (0) target = $region25
    $region24: #{tpu_custom_call.1} parent=1 // pred_region
      _
    $region25: #{tpu_custom_call.1} parent=1 // pred_fallthru
      _
    // Predicated region
    $region26: #{tpu_custom_call.1} parent=1 // pred_check
      _
    $region27: #{tpu_custom_call.1} parent=1 // pred_check_branch
      %30 = sbr.rel (0) target = $region29
    $region28: #{tpu_custom_call.1} parent=1 // pred_region
      _
    $region29: #{tpu_custom_call.1} parent=1 // pred_fallthru
      _
    // Predicated region
    $region30: #{tpu_custom_call.1} parent=1 // pred_check
      _
    $region31: #{tpu_custom_call.1} parent=1 // pred_check_branch
      %32 = sbr.rel (0) target = $region33
    $region32: #{tpu_custom_call.1} parent=1 // pred_region
      _
    $region33: #{tpu_custom_call.1} parent=1 // pred_fallthru
      _
    // Predicated region
    $region34: #{tpu_custom_call.1} parent=1 // pred_check
      _
    $region35: #{tpu_custom_call.1} parent=1 // pred_check_branch
      %34 = sbr.rel (0) target = $region37
    $region36: #{tpu_custom_call.1} parent=1 // pred_region
      _
    $region37: #{tpu_custom_call.1} parent=1 // pred_fallthru
      _
    %v35 = vld [vmem:[%s0] sm:$0xff]
    %v36 = vld [vmem:[%s0 + $0x8] sm:$0xff]
    %v37 = vld [vmem:[%s0 + $0x10] sm:$0xff]
    %v38 = vld [vmem:[%s0 + $0x18] sm:$0xff]
    %v39 = vld [vmem:[%s0 + $0x20] sm:$0xff]
    %v40 = vld [vmem:[%s0 + $0x28] sm:$0xff]
    %v41 = vld [vmem:[%s0 + $0x30] sm:$0xff]
    %v42 = vld [vmem:[%s0 + $0x38] sm:$0xff]
    %v43 = vld [vmem:[%s0 + $0x40] sm:$0xff]
    %v44 = vld [vmem:[%s0 + $0x48] sm:$0xff]
    %v45 = vld [vmem:[%s0 + $0x50] sm:$0xff]
    %v46 = vld [vmem:[%s0 + $0x58] sm:$0xff]
    %v47 = vld [vmem:[%s0 + $0x60] sm:$0xff]
    %v48 = vld [vmem:[%s0 + $0x68] sm:$0xff]
    %v49 = vld [vmem:[%s0 + $0x70] sm:$0xff]
    %v50 = vld [vmem:[%s1] sm:$0xff]
    %v51 = vld [vmem:[%s1 + $0x8] sm:$0xff]
    %v52 = vld [vmem:[%s2] sm:$0xf]
    %v53 = vld [vmem:[%s2 + $0x4] sm:$0xf]
    %v54 = vld [vmem:[%s2 + $0x8] sm:$0xf]
    %v55 = vld [vmem:[%s2 + $0xc] sm:$0xf]
    %v56 = vld [vmem:[%s2 + $0x10] sm:$0xf]
    %v57 = vld [vmem:[%s2 + $0x14] sm:$0xf]
    %v58 = vld [vmem:[%s2 + $0x18] sm:$0xf]
    %v59 = vld [vmem:[%s2 + $0x1c] sm:$0xf]
    %v60 = vld [vmem:[%s2 + $0x20] sm:$0xf]
    %v61 = vld [vmem:[%s2 + $0x24] sm:$0xf]
    %v62 = vld [vmem:[%s2 + $0x28] sm:$0xf]
    %v63 = vld [vmem:[%s2 + $0x2c] sm:$0xf]
    %v64 = vld [vmem:[%s2 + $0x30] sm:$0xf]
    %v65 = vld [vmem:[%s2 + $0x34] sm:$0xf]
    %v66 = vld [vmem:[%s2 + $0x38] sm:$0xf]
    %v67 = vld [vmem:[%s2 + $0x3c] sm:$0xf]
    %v68 = vld [vmem:[%s2 + $0x40] sm:$0xf]
    %v69 = vld [vmem:[%s2 + $0x44] sm:$0xf]
    %v70 = vld [vmem:[%s2 + $0x48] sm:$0xf]
    %v71 = vld [vmem:[%s2 + $0x4c] sm:$0xf]
    %v72 = vld [vmem:[%s2 + $0x50] sm:$0xf]
    %v73 = vld [vmem:[%s2 + $0x54] sm:$0xf]
    %v74 = vld [vmem:[%s2 + $0x58] sm:$0xf]
    %v75 = vld [vmem:[%s2 + $0x5c] sm:$0xf]
    %v76 = vld [vmem:[%s2 + $0x60] sm:$0xf]
    %v77 = vld [vmem:[%s2 + $0x64] sm:$0xf]
    %v78 = vld [vmem:[%s2 + $0x68] sm:$0xf]
    %v79 = vld [vmem:[%s2 + $0x6c] sm:$0xf]
    %v80 = vld [vmem:[%s2 + $0x70] sm:$0xf]
    %v81 = vld [vmem:[%s2 + $0x74] sm:$0xf]
    %v82 = vunpack.c.l.bf16 %v52
    %v83 = vunpack.c.l.bf16 %v53
    %v84 = vunpack.c.l.bf16 %v54
    %v85 = vunpack.c.l.bf16 %v55
    %v86 = vunpack.c.l.bf16 %v56
    %v87 = vunpack.c.l.bf16 %v57
    %v88 = vunpack.c.l.bf16 %v58
    %v89 = vunpack.c.l.bf16 %v59
    %v90 = vunpack.c.l.bf16 %v60
    %v91 = vunpack.c.l.bf16 %v61
    %v92 = vunpack.c.l.bf16 %v62
    %v93 = vunpack.c.l.bf16 %v63
    %v94 = vunpack.c.l.bf16 %v64
    %v95 = vunpack.c.l.bf16 %v65
    %v96 = vunpack.c.l.bf16 %v66
    %v97 = vunpack.c.l.bf16 %v67
    %v98 = vunpack.c.l.bf16 %v68
    %v99 = vunpack.c.l.bf16 %v69
    %v100 = vunpack.c.l.bf16 %v70
    %v101 = vunpack.c.l.bf16 %v71
    %v102 = vunpack.c.l.bf16 %v72
    %v103 = vunpack.c.l.bf16 %v73
    %v104 = vunpack.c.l.bf16 %v74
    %v105 = vunpack.c.l.bf16 %v75
    %v106 = vunpack.c.l.bf16 %v76
    %v107 = vunpack.c.l.bf16 %v77
    %v108 = vunpack.c.l.bf16 %v78
    %v109 = vunpack.c.l.bf16 %v79
    %v110 = vunpack.c.l.bf16 %v80
    %v111 = vunpack.c.l.bf16 %v81
    %v112 = vld [vmem:[%s3] sm:$0xf]
    %v113 = vld [vmem:[%s3 + $0x4] sm:$0xf]
    %v114 = vld [vmem:[%s3 + $0x8] sm:$0xf]
    %v115 = vld [vmem:[%s3 + $0xc] sm:$0xf]
    %v116 = vld [vmem:[%s3 + $0x10] sm:$0xf]
    %v117 = vld [vmem:[%s3 + $0x14] sm:$0xf]
    %v118 = vld [vmem:[%s3 + $0x18] sm:$0xf]
    %v119 = vld [vmem:[%s3 + $0x1c] sm:$0xf]
    %v120 = vld [vmem:[%s3 + $0x20] sm:$0xf]
    %v121 = vld [vmem:[%s3 + $0x24] sm:$0xf]
    %v122 = vld [vmem:[%s3 + $0x28] sm:$0xf]
    %v123 = vld [vmem:[%s3 + $0x2c] sm:$0xf]
    %v124 = vld [vmem:[%s3 + $0x30] sm:$0xf]
    %v125 = vld [vmem:[%s3 + $0x34] sm:$0xf]
    %v126 = vld [vmem:[%s3 + $0x38] sm:$0xf]
    %v127 = vunpack.c.l.bf16 %v112
    %v128 = vunpack.c.l.bf16 %v113
    %v129 = vunpack.c.l.bf16 %v114
    %v130 = vunpack.c.l.bf16 %v115
    %v131 = vunpack.c.l.bf16 %v116
    %v132 = vunpack.c.l.bf16 %v117
    %v133 = vunpack.c.l.bf16 %v118
    %v134 = vunpack.c.l.bf16 %v119
    %v135 = vunpack.c.l.bf16 %v120
    %v136 = vunpack.c.l.bf16 %v121
    %v137 = vunpack.c.l.bf16 %v122
    %v138 = vunpack.c.l.bf16 %v123
    %v139 = vunpack.c.l.bf16 %v124
    %v140 = vunpack.c.l.bf16 %v125
    %v141 = vunpack.c.l.bf16 %v126
    %v142 = vld [vmem:[%s4] sm:$0xf]
    %v143 = vld [vmem:[%s4 + $0x4] sm:$0xf]
    %v144 = vunpack.c.l.bf16 %v142
    %v145 = vunpack.c.l.bf16 %v143
    %v146 = vlaneseq
    %v147 = vshrl.u32 %v146, 7
    %v148 = vadd.s32 %v147, 8
    %v149 = vlaneseq
    %v150 = vand.u32 %v149, 127
    %vm151 = vcmp.eq.s32.totalorder %v147, %v150
    %vm152 = vcmp.eq.s32.totalorder %v148, %v150
    %v153 = vsel %vm151, 1, 0
    %v154 = vsel %vm152, 1, 0
    %v155 = vcvt.s32.f32 %v153
    %v156 = vcvt.s32.f32 %v154
    %v157 = vld [vmem:[%s5] sm:$0xff]
    %v158 = vld [vmem:[%s5 + $0x8] sm:$0xf]
    %v159 = vld [vmem:[%s5 + $0xc] sm:$0x1]
    %v160 = vld [vmem:[%s5 + $0xd] sm:$0x1]
    %v161 = vld [vmem:[%s5 + $0xe] sm:$0x1]
    %v162 = vld [vmem:[%s6] sm:$0xff]
    %v163 = vld [vmem:[%s6 + $0x8] sm:$0x1]
    %v164 = vperm.slane %v159, 0
    %vm165 = vcmask 97280
    %v167 = vsel %vm165, %v35, 0
    %v170 = vsel %vm165, %v36, 0
    %v173 = vsel %vm165, %v37, 0
    %v176 = vsel %vm165, %v38, 0
    %v179 = vsel %vm165, %v39, 0
    %v182 = vsel %vm165, %v40, 0
    %v185 = vsel %vm165, %v41, 0
    %v188 = vsel %vm165, %v42, 0
    %v191 = vsel %vm165, %v43, 0
    %v194 = vsel %vm165, %v44, 0
    %v197 = vsel %vm165, %v45, 0
    %v200 = vsel %vm165, %v46, 0
    %v203 = vsel %vm165, %v47, 0
    %v206 = vsel %vm165, %v48, 0
    %v209 = vsel %vm165, %v49, 0
    %vm211 = vcmask 1043456
    %v213 = vsel %vm211, %v158, 0
    %215 = vmatpush.msra.mxu0 0.0
    %216 = vmatpush.msra.mxu0 0.0
    %217 = vmatpush.msra.mxu0 0.0
    %218 = vmatpush.msra.mxu0 0.0
    %219 = vmatpush.msra.mxu0 0.0
    %220 = vmatpush.msra.mxu0 0.0
    %221 = vmatpush.msra.mxu0 0.0
    %222 = vmatpush.msra.mxu0 0.0
    %223 = vmatpush.msra.mxu0 0.0
    %224 = vmatpush.msra.mxu0 0.0
    %225 = vmatpush.msra.mxu0 0.0
    %226 = vmatpush.msra.mxu0 0.0
    %227 = vmatpush.msra.mxu0 0.0
    %228 = vmatpush.msra.mxu0 0.0
    %229 = vmatpush.msra.mxu0 %v213
    %230 = vmatpush.msra.mxu0 %v157
    %231 = vmatmul.f32.gmra.mxu0 %v167
    %v232 = vpop.f32.mrf.mxu0
    %v233 = vadd.f32 %v164, %v232
    %234 = vmatmul.f32.gmra.mxu0 %v170
    %v235 = vpop.f32.mrf.mxu0
    %v236 = vadd.f32 %v164, %v235
    %237 = vmatmul.f32.gmra.mxu0 %v173
    %v238 = vpop.f32.mrf.mxu0
    %v239 = vadd.f32 %v164, %v238
    %240 = vmatmul.f32.gmra.mxu0 %v176
    %v241 = vpop.f32.mrf.mxu0
    %v242 = vadd.f32 %v164, %v241
    %243 = vmatmul.f32.gmra.mxu0 %v179
    %v244 = vpop.f32.mrf.mxu0
    %v245 = vadd.f32 %v164, %v244
    %246 = vmatmul.f32.gmra.mxu0 %v182
    %v247 = vpop.f32.mrf.mxu0
    %v248 = vadd.f32 %v164, %v247
    %249 = vmatmul.f32.gmra.mxu0 %v185
    %v250 = vpop.f32.mrf.mxu0
    %v251 = vadd.f32 %v164, %v250
    %252 = vmatmul.f32.gmra.mxu0 %v188
    %v253 = vpop.f32.mrf.mxu0
    %v254 = vadd.f32 %v164, %v253
    %255 = vmatmul.f32.gmra.mxu0 %v191
    %v256 = vpop.f32.mrf.mxu0
    %v257 = vadd.f32 %v164, %v256
    %258 = vmatmul.f32.gmra.mxu0 %v194
    %v259 = vpop.f32.mrf.mxu0
    %v260 = vadd.f32 %v164, %v259
    %261 = vmatmul.f32.gmra.mxu0 %v197
    %v262 = vpop.f32.mrf.mxu0
    %v263 = vadd.f32 %v164, %v262
    %264 = vmatmul.f32.gmra.mxu0 %v200
    %v265 = vpop.f32.mrf.mxu0
    %v266 = vadd.f32 %v164, %v265
    %267 = vmatmul.f32.gmra.mxu0 %v203
    %v268 = vpop.f32.mrf.mxu0
    %v269 = vadd.f32 %v164, %v268
    %270 = vmatmul.f32.gmra.mxu0 %v206
    %v271 = vpop.f32.mrf.mxu0
    %v272 = vadd.f32 %v164, %v271
    %273 = vmatmul.f32.gmra.mxu0 %v209
    %v274 = vpop.f32.mrf.mxu0
    %v275 = vadd.f32 %v164, %v274
    %276 = vdwg.mxu0
    %vm277 = vcmp.ge.f32.partialorder %v233, 0.0
    %vm278 = vcmp.ge.f32.partialorder %v236, 0.0
    %vm279 = vcmp.ge.f32.partialorder %v239, 0.0
    %vm280 = vcmp.ge.f32.partialorder %v242, 0.0
    %vm281 = vcmp.ge.f32.partialorder %v245, 0.0
    %vm282 = vcmp.ge.f32.partialorder %v248, 0.0
    %vm283 = vcmp.ge.f32.partialorder %v251, 0.0
    %vm284 = vcmp.ge.f32.partialorder %v254, 0.0
    %vm285 = vcmp.ge.f32.partialorder %v257, 0.0
    %vm286 = vcmp.ge.f32.partialorder %v260, 0.0
    %vm287 = vcmp.ge.f32.partialorder %v263, 0.0
    %vm288 = vcmp.ge.f32.partialorder %v266, 0.0
    %vm289 = vcmp.ge.f32.partialorder %v269, 0.0
    %vm290 = vcmp.ge.f32.partialorder %v272, 0.0
    %vm291 = vcmp.ge.f32.partialorder %v275, 0.0
    %v292 = vmul.f32 %v233, 0.01
    %v293 = vmul.f32 %v236, 0.01
    %v294 = vmul.f32 %v239, 0.01
    %v295 = vmul.f32 %v242, 0.01
    %v296 = vmul.f32 %v245, 0.01
    %v297 = vmul.f32 %v248, 0.01
    %v298 = vmul.f32 %v251, 0.01
    %v299 = vmul.f32 %v254, 0.01
    %v300 = vmul.f32 %v257, 0.01
    %v301 = vmul.f32 %v260, 0.01
    %v302 = vmul.f32 %v263, 0.01
    %v303 = vmul.f32 %v266, 0.01
    %v304 = vmul.f32 %v269, 0.01
    %v305 = vmul.f32 %v272, 0.01
    %v306 = vmul.f32 %v275, 0.01
    %v307 = vsel %vm277, %v233, %v292
    %v308 = vsel %vm278, %v236, %v293
    %v309 = vsel %vm279, %v239, %v294
    %v310 = vsel %vm280, %v242, %v295
    %v311 = vsel %vm281, %v245, %v296
    %v312 = vsel %vm282, %v248, %v297
    %v313 = vsel %vm283, %v251, %v298
    %v314 = vsel %vm284, %v254, %v299
    %v315 = vsel %vm285, %v257, %v300
    %v316 = vsel %vm286, %v260, %v301
    %v317 = vsel %vm287, %v263, %v302
    %v318 = vsel %vm288, %v266, %v303
    %v319 = vsel %vm289, %v269, %v304
    %v320 = vsel %vm290, %v272, %v305
    %v321 = vsel %vm291, %v275, %v306
    %vm322 = vcmask 261120
    %v323 = vsel %vm322, %v307, 0.0
    %324 = vadd.xlane.f32.xlu0 %v323
    %v325 = vpop.xlane.xlu0 %324
    %v326 = vsel %vm322, %v308, 0.0
    %327 = vadd.xlane.f32.xlu0 %v326
    %v328 = vpop.xlane.xlu0 %327
    %v329 = vsel %vm322, %v309, 0.0
    %330 = vadd.xlane.f32.xlu0 %v329
    %v331 = vpop.xlane.xlu0 %330
    %v332 = vsel %vm322, %v310, 0.0
    %333 = vadd.xlane.f32.xlu0 %v332
    %v334 = vpop.xlane.xlu0 %333
    %v335 = vsel %vm322, %v311, 0.0
    %336 = vadd.xlane.f32.xlu0 %v335
    %v337 = vpop.xlane.xlu0 %336
    %v338 = vsel %vm322, %v312, 0.0
    %339 = vadd.xlane.f32.xlu0 %v338
    %v340 = vpop.xlane.xlu0 %339
    %v341 = vsel %vm322, %v313, 0.0
    %342 = vadd.xlane.f32.xlu0 %v341
    %v343 = vpop.xlane.xlu0 %342
    %v344 = vsel %vm322, %v314, 0.0
    %345 = vadd.xlane.f32.xlu0 %v344
    %v346 = vpop.xlane.xlu0 %345
    %v347 = vsel %vm322, %v315, 0.0
    %348 = vadd.xlane.f32.xlu0 %v347
    %v349 = vpop.xlane.xlu0 %348
    %v350 = vsel %vm322, %v316, 0.0
    %351 = vadd.xlane.f32.xlu0 %v350
    %v352 = vpop.xlane.xlu0 %351
    %v353 = vsel %vm322, %v317, 0.0
    %354 = vadd.xlane.f32.xlu0 %v353
    %v355 = vpop.xlane.xlu0 %354
    %v356 = vsel %vm322, %v318, 0.0
    %357 = vadd.xlane.f32.xlu0 %v356
    %v358 = vpop.xlane.xlu0 %357
    %v359 = vsel %vm322, %v319, 0.0
    %360 = vadd.xlane.f32.xlu0 %v359
    %v361 = vpop.xlane.xlu0 %360
    %v362 = vsel %vm322, %v320, 0.0
    %363 = vadd.xlane.f32.xlu0 %v362
    %v364 = vpop.xlane.xlu0 %363
    %v365 = vsel %vm322, %v321, 0.0
    %366 = vadd.xlane.f32.xlu0 %v365
    %v367 = vpop.xlane.xlu0 %366
    %v368 = vrcp.pop 32.0
    %v369 = vmul.f32 32.0, %v368
    %v370 = vsub.f32 1.0, %v369
    %v371 = vmul.f32 %v368, %v370
    %v372 = vadd.f32 %v368, %v371
    %vm373 = vweird.f32 %v368
    %v374 = vsel %vm373, %v368, %v372
    %v375 = vmul.f32 %v325, %v374
    %v376 = vmul.f32 %v328, %v374
    %v377 = vmul.f32 %v331, %v374
    %v378 = vmul.f32 %v334, %v374
    %v379 = vmul.f32 %v337, %v374
    %v380 = vmul.f32 %v340, %v374
    %v381 = vmul.f32 %v343, %v374
    %v382 = vmul.f32 %v346, %v374
    %v383 = vmul.f32 %v349, %v374
    %v384 = vmul.f32 %v352, %v374
    %v385 = vmul.f32 %v355, %v374
    %v386 = vmul.f32 %v358, %v374
    %v387 = vmul.f32 %v361, %v374
    %v388 = vmul.f32 %v364, %v374
    %v389 = vmul.f32 %v367, %v374
    %v390 = vmul.f32 %v127, %v375
    %v391 = vmul.f32 %v128, %v376
    %v392 = vmul.f32 %v129, %v377
    %v393 = vmul.f32 %v130, %v378
    %v394 = vmul.f32 %v131, %v379
    %v395 = vmul.f32 %v132, %v380
    %v396 = vmul.f32 %v133, %v381
    %v397 = vmul.f32 %v134, %v382
    %v398 = vmul.f32 %v135, %v383
    %v399 = vmul.f32 %v136, %v384
    %v400 = vmul.f32 %v137, %v385
    %v401 = vmul.f32 %v138, %v386
    %v402 = vmul.f32 %v139, %v387
    %v403 = vmul.f32 %v140, %v388
    %v404 = vmul.f32 %v141, %v389
    %vm405 = vcmask 982016
    %v407 = vsel %vm405, %v144, 0
    %v410 = vsel %vm405, %v145, 0
    %412 = vmatpush.msra.mxu0 0.0
    %413 = vmatpush.msra.mxu0 %v404
    %414 = vmatpush.msra.mxu0 %v403
    %415 = vmatpush.msra.mxu0 %v402
    %416 = vmatpush.msra.mxu0 %v401
    %417 = vmatpush.msra.mxu0 %v400
    %418 = vmatpush.msra.mxu0 %v399
    %419 = vmatpush.msra.mxu0 %v398
    %420 = vmatpush.msra.mxu0 %v397
    %421 = vmatpush.msra.mxu0 %v396
    %422 = vmatpush.msra.mxu0 %v395
    %423 = vmatpush.msra.mxu0 %v394
    %424 = vmatpush.msra.mxu0 %v393
    %425 = vmatpush.msra.mxu0 %v392
    %426 = vmatpush.msra.mxu0 %v391
    %427 = vmatpush.msra.mxu0 %v390
    %428 = vmatmul.f32.gmra.mxu0 %v407
    %v429 = vpop.f32.mrf.mxu0
    %v430 = vadd.f32 0.0, %v429
    %431 = vmatmul.f32.gmra.mxu0 %v410
    %v432 = vpop.f32.mrf.mxu0
    %v433 = vadd.f32 0.0, %v432
    %434 = vdwg.mxu0
    %435 = vxpose.xlu0.b32.start [1/16] %v430, 128
    %436 = vxpose.xlu0.b32.cont [2/16] %v433, 128
    %437 = vxpose.xlu0.b32.cont [3/16] 0.0, 128
    %438 = vxpose.xlu0.b32.cont [4/16] 0.0, 128
    %439 = vxpose.xlu0.b32.cont [5/16] 0.0, 128
    %440 = vxpose.xlu0.b32.cont [6/16] 0.0, 128
    %441 = vxpose.xlu0.b32.cont [7/16] 0.0, 128
    %442 = vxpose.xlu0.b32.cont [8/16] 0.0, 128
    %443 = vxpose.xlu0.b32.cont [9/16] 0.0, 128
    %444 = vxpose.xlu0.b32.cont [10/16] 0.0, 128
    %445 = vxpose.xlu0.b32.cont [11/16] 0.0, 128
    %446 = vxpose.xlu0.b32.cont [12/16] 0.0, 128
    %447 = vxpose.xlu0.b32.cont [13/16] 0.0, 128
    %448 = vxpose.xlu0.b32.cont [14/16] 0.0, 128
    %449 = vxpose.xlu0.b32.cont [15/16] 0.0, 128
    %450 = vxpose.xlu0.b32.end [16/16] 0.0, 128
    %v451 = vpop.trf.xlu0
    %v452 = vpop.trf.xlu0
    %v453 = vpop.trf.xlu0
    %v454 = vpop.trf.xlu0
    %v455 = vpop.trf.xlu0
    %v456 = vpop.trf.xlu0
    %v457 = vpop.trf.xlu0
    %v458 = vpop.trf.xlu0
    %v459 = vpop.trf.xlu0
    %v460 = vpop.trf.xlu0
    %v461 = vpop.trf.xlu0
    %v462 = vpop.trf.xlu0
    %v463 = vpop.trf.xlu0
    %v464 = vpop.trf.xlu0
    %v465 = vpop.trf.xlu0
    %v466 = vpop.trf.xlu0
    %v467 = vadd.f32 %v430, %v451
    %v468 = vadd.f32 %v433, %v452
    %v469 = vadd.f32 %v467, %v155
    %v470 = vadd.f32 %v468, %v156
    %vm471 = vcmask 130048
    %v472 = vsel %vm471, %v469, 0.0
    %473 = vadd.xlane.f32.xlu0 %v472
    %v474 = vpop.xlane.xlu0 %473
    %v475 = vsel %vm471, %v470, 0.0
    %476 = vadd.xlane.f32.xlu0 %v475
    %v477 = vpop.xlane.xlu0 %476
    %v478 = vrsqrt.pop %v474
    %v479 = vmul.f32 %v478, %v474
    %v480 = vmul.f32 %v479, %v478
    %v481 = vmul.f32 0.5, %v480
    %v482 = vsub.f32 1.5, %v481
    %v483 = vmul.f32 %v478, %v482
    %vm484 = vweird.f32 %v474
    %vm485 = vweird.f32 %v478
    %vm486 = vmor %vm484, %vm485
    %v487 = vsel %vm486, %v478, %v483
    %v488 = vrsqrt.pop %v477
    %v489 = vmul.f32 %v488, %v477
    %v490 = vmul.f32 %v489, %v488
    %v491 = vmul.f32 0.5, %v490
    %v492 = vsub.f32 1.5, %v491
    %v493 = vmul.f32 %v488, %v492
    %vm494 = vweird.f32 %v477
    %vm495 = vweird.f32 %v488
    %vm496 = vmor %vm494, %vm495
    %v497 = vsel %vm496, %v488, %v493
    %v498 = vadd.f32 %v472, %v475
    %v499 = vrot.slane %v498, 4
    %v500 = vadd.f32 %v498, %v499
    %v501 = vrot.slane %v500, 2
    %v502 = vadd.f32 %v500, %v501
    %v503 = vrot.slane %v502, 1
    %v504 = vadd.f32 %v502, %v503
    %v505 = vrsqrt.pop %v504
    %v506 = vmul.f32 %v505, %v504
    %v507 = vmul.f32 %v506, %v505
    %v508 = vmul.f32 0.5, %v507
    %v509 = vsub.f32 1.5, %v508
    %v510 = vmul.f32 %v505, %v509
    %vm511 = vweird.f32 %v504
    %vm512 = vweird.f32 %v505
    %vm513 = vmor %vm511, %vm512
    %v514 = vsel %vm513, %v505, %v510
    %v515 = vmul.f32 %v469, %v487
    %v516 = vmul.f32 %v470, %v497
    %v517 = vmul.f32 %v515, %v514
    %v518 = vmul.f32 %v516, %v514
    %vm519 = vcmask 64512
    %v521 = vsel %vm519, %v50, 0
    %v524 = vsel %vm519, %v51, 0
    %526 = vmatpush.msra.mxu0 0.0
    %527 = vmatpush.msra.mxu0 0.0
    %528 = vmatpush.msra.mxu0 0.0
    %529 = vmatpush.msra.mxu0 0.0
    %530 = vmatpush.msra.mxu0 0.0
    %531 = vmatpush.msra.mxu0 0.0
    %532 = vmatpush.msra.mxu0 0.0
    %533 = vmatpush.msra.mxu0 0.0
    %534 = vmatpush.msra.mxu0 0.0
    %535 = vmatpush.msra.mxu0 0.0
    %536 = vmatpush.msra.mxu0 0.0
    %537 = vmatpush.msra.mxu0 0.0
    %538 = vmatpush.msra.mxu0 0.0
    %539 = vmatpush.msra.mxu0 0.0
    %540 = vmatpush.msra.mxu0 0.0
    %541 = vmatpush.msra.mxu0 %v162
    %542 = vmatmul.f32.gmra.mxu0 %v521
    %v543 = vpop.f32.mrf.mxu0
    %v544 = vadd.f32 0.0, %v543
    %545 = vmatmul.f32.gmra.mxu0 %v524
    %v546 = vpop.f32.mrf.mxu0
    %v547 = vadd.f32 0.0, %v546
    %548 = vdwg.mxu0
    %v549 = vperm.slane %v163, 0
    %v551 = vsel %vm471, %v517, 0
    %v554 = vsel %vm471, %v518, 0
    %556 = vmatpush.msra.mxu0 0.0
    %557 = vmatpush.msra.mxu0 0.0
    %558 = vmatpush.msra.mxu0 0.0
    %559 = vmatpush.msra.mxu0 0.0
    %560 = vmatpush.msra.mxu0 0.0
    %561 = vmatpush.msra.mxu0 0.0
    %562 = vmatpush.msra.mxu0 0.0
    %563 = vmatpush.msra.mxu0 0.0
    %564 = vmatpush.msra.mxu0 0.0
    %565 = vmatpush.msra.mxu0 0.0
    %566 = vmatpush.msra.mxu0 0.0
    %567 = vmatpush.msra.mxu0 0.0
    %568 = vmatpush.msra.mxu0 0.0
    %569 = vmatpush.msra.mxu0 0.0
    %570 = vmatpush.msra.mxu0 %v547
    %571 = vmatpush.msra.mxu0 %v544
    %572 = vmatmul.f32.gmra.mxu0 %v551
    %v573 = vpop.f32.mrf.mxu0
    %v574 = vadd.f32 %v549, %v573
    %575 = vmatmul.f32.gmra.mxu0 %v554
    %v576 = vpop.f32.mrf.mxu0
    %v577 = vadd.f32 %v549, %v576
    %578 = vdwg.mxu0
    %vm579 = vcmp.ge.f32.partialorder %v574, 0.0
    %vm580 = vcmp.ge.f32.partialorder %v577, 0.0
    %v581 = vmul.f32 %v574, 0.01
    %v582 = vmul.f32 %v577, 0.01
    %v583 = vsel %vm579, %v574, %v581
    %v584 = vsel %vm580, %v577, %v582
    %v586 = vsel %vm471, %v82, 0
    %v589 = vsel %vm471, %v83, 0
    %v592 = vsel %vm471, %v84, 0
    %v595 = vsel %vm471, %v85, 0
    %v598 = vsel %vm471, %v86, 0
    %v601 = vsel %vm471, %v87, 0
    %v604 = vsel %vm471, %v88, 0
    %v607 = vsel %vm471, %v89, 0
    %v610 = vsel %vm471, %v90, 0
    %v613 = vsel %vm471, %v91, 0
    %v616 = vsel %vm471, %v92, 0
    %v619 = vsel %vm471, %v93, 0
    %v622 = vsel %vm471, %v94, 0
    %v625 = vsel %vm471, %v95, 0
    %v628 = vsel %vm471, %v96, 0
    %v631 = vsel %vm471, %v97, 0
    %v634 = vsel %vm471, %v98, 0
    %v637 = vsel %vm471, %v99, 0
    %v640 = vsel %vm471, %v100, 0
    %v643 = vsel %vm471, %v101, 0
    %v646 = vsel %vm471, %v102, 0
    %v649 = vsel %vm471, %v103, 0
    %v652 = vsel %vm471, %v104, 0
    %v655 = vsel %vm471, %v105, 0
    %v658 = vsel %vm471, %v106, 0
    %v661 = vsel %vm471, %v107, 0
    %v664 = vsel %vm471, %v108, 0
    %v667 = vsel %vm471, %v109, 0
    %v670 = vsel %vm471, %v110, 0
    %v673 = vsel %vm471, %v111, 0
    %675 = vmatpush.msra.mxu0 0.0
    %676 = vmatpush.msra.mxu0 0.0
    %677 = vmatpush.msra.mxu0 0.0
    %678 = vmatpush.msra.mxu0 0.0
    %679 = vmatpush.msra.mxu0 0.0
    %680 = vmatpush.msra.mxu0 0.0
    %681 = vmatpush.msra.mxu0 0.0
    %682 = vmatpush.msra.mxu0 0.0
    %683 = vmatpush.msra.mxu0 0.0
    %684 = vmatpush.msra.mxu0 0.0
    %685 = vmatpush.msra.mxu0 0.0
    %686 = vmatpush.msra.mxu0 0.0
    %687 = vmatpush.msra.mxu0 0.0
    %688 = vmatpush.msra.mxu0 0.0
    %689 = vmatpush.msra.mxu0 %v584
    %690 = vmatpush.msra.mxu0 %v583
    %691 = vmatmul.f32.gmra.mxu0 %v586
    %v692 = vpop.f32.mrf.mxu0
    %v693 = vadd.f32 0.0, %v692
    %694 = vmatmul.f32.gmra.mxu0 %v589
    %v695 = vpop.f32.mrf.mxu0
    %v696 = vadd.f32 0.0, %v695
    %697 = vmatmul.f32.gmra.mxu0 %v592
    %v698 = vpop.f32.mrf.mxu0
    %v699 = vadd.f32 0.0, %v698
    %700 = vmatmul.f32.gmra.mxu0 %v595
    %v701 = vpop.f32.mrf.mxu0
    %v702 = vadd.f32 0.0, %v701
    %703 = vmatmul.f32.gmra.mxu0 %v598
    %v704 = vpop.f32.mrf.mxu0
    %v705 = vadd.f32 0.0, %v704
    %706 = vmatmul.f32.gmra.mxu0 %v601
    %v707 = vpop.f32.mrf.mxu0
    %v708 = vadd.f32 0.0, %v707
    %709 = vmatmul.f32.gmra.mxu0 %v604
    %v710 = vpop.f32.mrf.mxu0
    %v711 = vadd.f32 0.0, %v710
    %712 = vmatmul.f32.gmra.mxu0 %v607
    %v713 = vpop.f32.mrf.mxu0
    %v714 = vadd.f32 0.0, %v713
    %715 = vmatmul.f32.gmra.mxu0 %v610
    %v716 = vpop.f32.mrf.mxu0
    %v717 = vadd.f32 0.0, %v716
    %718 = vmatmul.f32.gmra.mxu0 %v613
    %v719 = vpop.f32.mrf.mxu0
    %v720 = vadd.f32 0.0, %v719
    %721 = vmatmul.f32.gmra.mxu0 %v616
    %v722 = vpop.f32.mrf.mxu0
    %v723 = vadd.f32 0.0, %v722
    %724 = vmatmul.f32.gmra.mxu0 %v619
    %v725 = vpop.f32.mrf.mxu0
    %v726 = vadd.f32 0.0, %v725
    %727 = vmatmul.f32.gmra.mxu0 %v622
    %v728 = vpop.f32.mrf.mxu0
    %v729 = vadd.f32 0.0, %v728
    %730 = vmatmul.f32.gmra.mxu0 %v625
    %v731 = vpop.f32.mrf.mxu0
    %v732 = vadd.f32 0.0, %v731
    %733 = vmatmul.f32.gmra.mxu0 %v628
    %v734 = vpop.f32.mrf.mxu0
    %v735 = vadd.f32 0.0, %v734
    %736 = vmatmul.f32.gmra.mxu0 %v631
    %v737 = vpop.f32.mrf.mxu0
    %v738 = vadd.f32 0.0, %v737
    %739 = vmatmul.f32.gmra.mxu0 %v634
    %v740 = vpop.f32.mrf.mxu0
    %v741 = vadd.f32 0.0, %v740
    %742 = vmatmul.f32.gmra.mxu0 %v637
    %v743 = vpop.f32.mrf.mxu0
    %v744 = vadd.f32 0.0, %v743
    %745 = vmatmul.f32.gmra.mxu0 %v640
    %v746 = vpop.f32.mrf.mxu0
    %v747 = vadd.f32 0.0, %v746
    %748 = vmatmul.f32.gmra.mxu0 %v643
    %v749 = vpop.f32.mrf.mxu0
    %v750 = vadd.f32 0.0, %v749
    %751 = vmatmul.f32.gmra.mxu0 %v646
    %v752 = vpop.f32.mrf.mxu0
    %v753 = vadd.f32 0.0, %v752
    %754 = vmatmul.f32.gmra.mxu0 %v649
    %v755 = vpop.f32.mrf.mxu0
    %v756 = vadd.f32 0.0, %v755
    %757 = vmatmul.f32.gmra.mxu0 %v652
    %v758 = vpop.f32.mrf.mxu0
    %v759 = vadd.f32 0.0, %v758
    %760 = vmatmul.f32.gmra.mxu0 %v655
    %v761 = vpop.f32.mrf.mxu0
    %v762 = vadd.f32 0.0, %v761
    %763 = vmatmul.f32.gmra.mxu0 %v658
    %v764 = vpop.f32.mrf.mxu0
    %v765 = vadd.f32 0.0, %v764
    %766 = vmatmul.f32.gmra.mxu0 %v661
    %v767 = vpop.f32.mrf.mxu0
    %v768 = vadd.f32 0.0, %v767
    %769 = vmatmul.f32.gmra.mxu0 %v664
    %v770 = vpop.f32.mrf.mxu0
    %v771 = vadd.f32 0.0, %v770
    %772 = vmatmul.f32.gmra.mxu0 %v667
    %v773 = vpop.f32.mrf.mxu0
    %v774 = vadd.f32 0.0, %v773
    %775 = vmatmul.f32.gmra.mxu0 %v670
    %v776 = vpop.f32.mrf.mxu0
    %v777 = vadd.f32 0.0, %v776
    %778 = vmatmul.f32.gmra.mxu0 %v673
    %v779 = vpop.f32.mrf.mxu0
    %v780 = vadd.f32 0.0, %v779
    %781 = vdwg.mxu0
    %v782 = vmul.f32 %v693, %v738
    %v783 = vmul.f32 %v696, %v741
    %v784 = vmul.f32 %v699, %v744
    %v785 = vmul.f32 %v702, %v747
    %v786 = vmul.f32 %v705, %v750
    %v787 = vmul.f32 %v708, %v753
    %v788 = vmul.f32 %v711, %v756
    %v789 = vmul.f32 %v714, %v759
    %v790 = vmul.f32 %v717, %v762
    %v791 = vmul.f32 %v720, %v765
    %v792 = vmul.f32 %v723, %v768
    %v793 = vmul.f32 %v726, %v771
    %v794 = vmul.f32 %v729, %v774
    %v795 = vmul.f32 %v732, %v777
    %v796 = vmul.f32 %v735, %v780
    %v797 = vsel %vm322, %v782, 0.0
    %798 = vadd.xlane.f32.xlu0 %v797
    %v799 = vpop.xlane.xlu0 %798
    %v800 = vsel %vm322, %v783, 0.0
    %801 = vadd.xlane.f32.xlu0 %v800
    %v802 = vpop.xlane.xlu0 %801
    %v803 = vsel %vm322, %v784, 0.0
    %804 = vadd.xlane.f32.xlu0 %v803
    %v805 = vpop.xlane.xlu0 %804
    %v806 = vsel %vm322, %v785, 0.0
    %807 = vadd.xlane.f32.xlu0 %v806
    %v808 = vpop.xlane.xlu0 %807
    %v809 = vsel %vm322, %v786, 0.0
    %810 = vadd.xlane.f32.xlu0 %v809
    %v811 = vpop.xlane.xlu0 %810
    %v812 = vsel %vm322, %v787, 0.0
    %813 = vadd.xlane.f32.xlu0 %v812
    %v814 = vpop.xlane.xlu0 %813
    %v815 = vsel %vm322, %v788, 0.0
    %816 = vadd.xlane.f32.xlu0 %v815
    %v817 = vpop.xlane.xlu0 %816
    %v818 = vsel %vm322, %v789, 0.0
    %819 = vadd.xlane.f32.xlu0 %v818
    %v820 = vpop.xlane.xlu0 %819
    %v821 = vsel %vm322, %v790, 0.0
    %822 = vadd.xlane.f32.xlu0 %v821
    %v823 = vpop.xlane.xlu0 %822
    %v824 = vsel %vm322, %v791, 0.0
    %825 = vadd.xlane.f32.xlu0 %v824
    %v826 = vpop.xlane.xlu0 %825
    %v827 = vsel %vm322, %v792, 0.0
    %828 = vadd.xlane.f32.xlu0 %v827
    %v829 = vpop.xlane.xlu0 %828
    %v830 = vsel %vm322, %v793, 0.0
    %831 = vadd.xlane.f32.xlu0 %v830
    %v832 = vpop.xlane.xlu0 %831
    %v833 = vsel %vm322, %v794, 0.0
    %834 = vadd.xlane.f32.xlu0 %v833
    %v835 = vpop.xlane.xlu0 %834
    %v836 = vsel %vm322, %v795, 0.0
    %837 = vadd.xlane.f32.xlu0 %v836
    %v838 = vpop.xlane.xlu0 %837
    %v839 = vsel %vm322, %v796, 0.0
    %840 = vadd.xlane.f32.xlu0 %v839
    %v841 = vpop.xlane.xlu0 %840
    %v842 = vxor.u32 %v799, 2147483648
    %v843 = vxor.u32 %v802, 2147483648
    %v844 = vxor.u32 %v805, 2147483648
    %v845 = vxor.u32 %v808, 2147483648
    %v846 = vxor.u32 %v811, 2147483648
    %v847 = vxor.u32 %v814, 2147483648
    %v848 = vxor.u32 %v817, 2147483648
    %v849 = vxor.u32 %v820, 2147483648
    %v850 = vxor.u32 %v823, 2147483648
    %v851 = vxor.u32 %v826, 2147483648
    %v852 = vxor.u32 %v829, 2147483648
    %v853 = vxor.u32 %v832, 2147483648
    %v854 = vxor.u32 %v835, 2147483648
    %v855 = vxor.u32 %v838, 2147483648
    %v856 = vxor.u32 %v841, 2147483648
    %v857 = vmul.f32 %v842, 1.442695
    %v858 = vpow.pop %v857
    %v859 = vmul.f32 %v843, 1.442695
    %v860 = vpow.pop %v859
    %v861 = vmul.f32 %v844, 1.442695
    %v862 = vpow.pop %v861
    %v863 = vmul.f32 %v845, 1.442695
    %v864 = vpow.pop %v863
    %v865 = vmul.f32 %v846, 1.442695
    %v866 = vpow.pop %v865
    %v867 = vmul.f32 %v847, 1.442695
    %v868 = vpow.pop %v867
    %v869 = vmul.f32 %v848, 1.442695
    %v870 = vpow.pop %v869
    %v871 = vmul.f32 %v849, 1.442695
    %v872 = vpow.pop %v871
    %v873 = vmul.f32 %v850, 1.442695
    %v874 = vpow.pop %v873
    %v875 = vmul.f32 %v851, 1.442695
    %v876 = vpow.pop %v875
    %v877 = vmul.f32 %v852, 1.442695
    %v878 = vpow.pop %v877
    %v879 = vmul.f32 %v853, 1.442695
    %v880 = vpow.pop %v879
    %v881 = vmul.f32 %v854, 1.442695
    %v882 = vpow.pop %v881
    %v883 = vmul.f32 %v855, 1.442695
    %v884 = vpow.pop %v883
    %v885 = vmul.f32 %v856, 1.442695
    %v886 = vpow.pop %v885
    %v887 = vadd.f32 %v858, 1.0
    %v888 = vadd.f32 %v860, 1.0
    %v889 = vadd.f32 %v862, 1.0
    %v890 = vadd.f32 %v864, 1.0
    %v891 = vadd.f32 %v866, 1.0
    %v892 = vadd.f32 %v868, 1.0
    %v893 = vadd.f32 %v870, 1.0
    %v894 = vadd.f32 %v872, 1.0
    %v895 = vadd.f32 %v874, 1.0
    %v896 = vadd.f32 %v876, 1.0
    %v897 = vadd.f32 %v878, 1.0
    %v898 = vadd.f32 %v880, 1.0
    %v899 = vadd.f32 %v882, 1.0
    %v900 = vadd.f32 %v884, 1.0
    %v901 = vadd.f32 %v886, 1.0
    %v902 = vrcp.pop %v887
    %v903 = vmul.f32 %v887, %v902
    %v904 = vsub.f32 1.0, %v903
    %v905 = vmul.f32 %v902, %v904
    %v906 = vadd.f32 %v902, %v905
    %vm907 = vweird.f32 %v887
    %vm908 = vweird.f32 %v902
    %vm909 = vmor %vm907, %vm908
    %v910 = vsel %vm909, %v902, %v906
    %v911 = vand.u32 2147483647, %v887
    %vm912 = vcmp.eq.f32.partialorder %v911, 8.507059e+37
    %v913 = vand.u32 %v887, 2147483648
    %v914 = vor.u32 1.1754944e-38, %v913
    %v915 = vsel %vm912, %v914, %v910
    %v916 = vmul.f32 1.0, %v915
    %v917 = vrcp.pop %v888
    %v918 = vmul.f32 %v888, %v917
    %v919 = vsub.f32 1.0, %v918
    %v920 = vmul.f32 %v917, %v919
    %v921 = vadd.f32 %v917, %v920
    %vm922 = vweird.f32 %v888
    %vm923 = vweird.f32 %v917
    %vm924 = vmor %vm922, %vm923
    %v925 = vsel %vm924, %v917, %v921
    %v926 = vand.u32 2147483647, %v888
    %vm927 = vcmp.eq.f32.partialorder %v926, 8.507059e+37
    %v928 = vand.u32 %v888, 2147483648
    %v929 = vor.u32 1.1754944e-38, %v928
    %v930 = vsel %vm927, %v929, %v925
    %v931 = vmul.f32 1.0, %v930
    %v932 = vrcp.pop %v889
    %v933 = vmul.f32 %v889, %v932
    %v934 = vsub.f32 1.0, %v933
    %v935 = vmul.f32 %v932, %v934
    %v936 = vadd.f32 %v932, %v935
    %vm937 = vweird.f32 %v889
    %vm938 = vweird.f32 %v932
    %vm939 = vmor %vm937, %vm938
    %v940 = vsel %vm939, %v932, %v936
    %v941 = vand.u32 2147483647, %v889
    %vm942 = vcmp.eq.f32.partialorder %v941, 8.507059e+37
    %v943 = vand.u32 %v889, 2147483648
    %v944 = vor.u32 1.1754944e-38, %v943
    %v945 = vsel %vm942, %v944, %v940
    %v946 = vmul.f32 1.0, %v945
    %v947 = vrcp.pop %v890
    %v948 = vmul.f32 %v890, %v947
    %v949 = vsub.f32 1.0, %v948
    %v950 = vmul.f32 %v947, %v949
    %v951 = vadd.f32 %v947, %v950
    %vm952 = vweird.f32 %v890
    %vm953 = vweird.f32 %v947
    %vm954 = vmor %vm952, %vm953
    %v955 = vsel %vm954, %v947, %v951
    %v956 = vand.u32 2147483647, %v890
    %vm957 = vcmp.eq.f32.partialorder %v956, 8.507059e+37
    %v958 = vand.u32 %v890, 2147483648
    %v959 = vor.u32 1.1754944e-38, %v958
    %v960 = vsel %vm957, %v959, %v955
    %v961 = vmul.f32 1.0, %v960
    %v962 = vrcp.pop %v891
    %v963 = vmul.f32 %v891, %v962
    %v964 = vsub.f32 1.0, %v963
    %v965 = vmul.f32 %v962, %v964
    %v966 = vadd.f32 %v962, %v965
    %vm967 = vweird.f32 %v891
    %vm968 = vweird.f32 %v962
    %vm969 = vmor %vm967, %vm968
    %v970 = vsel %vm969, %v962, %v966
    %v971 = vand.u32 2147483647, %v891
    %vm972 = vcmp.eq.f32.partialorder %v971, 8.507059e+37
    %v973 = vand.u32 %v891, 2147483648
    %v974 = vor.u32 1.1754944e-38, %v973
    %v975 = vsel %vm972, %v974, %v970
    %v976 = vmul.f32 1.0, %v975
    %v977 = vrcp.pop %v892
    %v978 = vmul.f32 %v892, %v977
    %v979 = vsub.f32 1.0, %v978
    %v980 = vmul.f32 %v977, %v979
    %v981 = vadd.f32 %v977, %v980
    %vm982 = vweird.f32 %v892
    %vm983 = vweird.f32 %v977
    %vm984 = vmor %vm982, %vm983
    %v985 = vsel %vm984, %v977, %v981
    %v986 = vand.u32 2147483647, %v892
    %vm987 = vcmp.eq.f32.partialorder %v986, 8.507059e+37
    %v988 = vand.u32 %v892, 2147483648
    %v989 = vor.u32 1.1754944e-38, %v988
    %v990 = vsel %vm987, %v989, %v985
    %v991 = vmul.f32 1.0, %v990
    %v992 = vrcp.pop %v893
    %v993 = vmul.f32 %v893, %v992
    %v994 = vsub.f32 1.0, %v993
    %v995 = vmul.f32 %v992, %v994
    %v996 = vadd.f32 %v992, %v995
    %vm997 = vweird.f32 %v893
    %vm998 = vweird.f32 %v992
    %vm999 = vmor %vm997, %vm998
    %v1000 = vsel %vm999, %v992, %v996
    %v1001 = vand.u32 2147483647, %v893
    %vm1002 = vcmp.eq.f32.partialorder %v1001, 8.507059e+37
    %v1003 = vand.u32 %v893, 2147483648
    %v1004 = vor.u32 1.1754944e-38, %v1003
    %v1005 = vsel %vm1002, %v1004, %v1000
    %v1006 = vmul.f32 1.0, %v1005
    %v1007 = vrcp.pop %v894
    %v1008 = vmul.f32 %v894, %v1007
    %v1009 = vsub.f32 1.0, %v1008
    %v1010 = vmul.f32 %v1007, %v1009
    %v1011 = vadd.f32 %v1007, %v1010
    %vm1012 = vweird.f32 %v894
    %vm1013 = vweird.f32 %v1007
    %vm1014 = vmor %vm1012, %vm1013
    %v1015 = vsel %vm1014, %v1007, %v1011
    %v1016 = vand.u32 2147483647, %v894
    %vm1017 = vcmp.eq.f32.partialorder %v1016, 8.507059e+37
    %v1018 = vand.u32 %v894, 2147483648
    %v1019 = vor.u32 1.1754944e-38, %v1018
    %v1020 = vsel %vm1017, %v1019, %v1015
    %v1021 = vmul.f32 1.0, %v1020
    %v1022 = vrcp.pop %v895
    %v1023 = vmul.f32 %v895, %v1022
    %v1024 = vsub.f32 1.0, %v1023
    %v1025 = vmul.f32 %v1022, %v1024
    %v1026 = vadd.f32 %v1022, %v1025
    %vm1027 = vweird.f32 %v895
    %vm1028 = vweird.f32 %v1022
    %vm1029 = vmor %vm1027, %vm1028
    %v1030 = vsel %vm1029, %v1022, %v1026
    %v1031 = vand.u32 2147483647, %v895
    %vm1032 = vcmp.eq.f32.partialorder %v1031, 8.507059e+37
    %v1033 = vand.u32 %v895, 2147483648
    %v1034 = vor.u32 1.1754944e-38, %v1033
    %v1035 = vsel %vm1032, %v1034, %v1030
    %v1036 = vmul.f32 1.0, %v1035
    %v1037 = vrcp.pop %v896
    %v1038 = vmul.f32 %v896, %v1037
    %v1039 = vsub.f32 1.0, %v1038
    %v1040 = vmul.f32 %v1037, %v1039
    %v1041 = vadd.f32 %v1037, %v1040
    %vm1042 = vweird.f32 %v896
    %vm1043 = vweird.f32 %v1037
    %vm1044 = vmor %vm1042, %vm1043
    %v1045 = vsel %vm1044, %v1037, %v1041
    %v1046 = vand.u32 2147483647, %v896
    %vm1047 = vcmp.eq.f32.partialorder %v1046, 8.507059e+37
    %v1048 = vand.u32 %v896, 2147483648
    %v1049 = vor.u32 1.1754944e-38, %v1048
    %v1050 = vsel %vm1047, %v1049, %v1045
    %v1051 = vmul.f32 1.0, %v1050
    %v1052 = vrcp.pop %v897
    %v1053 = vmul.f32 %v897, %v1052
    %v1054 = vsub.f32 1.0, %v1053
    %v1055 = vmul.f32 %v1052, %v1054
    %v1056 = vadd.f32 %v1052, %v1055
    %vm1057 = vweird.f32 %v897
    %vm1058 = vweird.f32 %v1052
    %vm1059 = vmor %vm1057, %vm1058
    %v1060 = vsel %vm1059, %v1052, %v1056
    %v1061 = vand.u32 2147483647, %v897
    %vm1062 = vcmp.eq.f32.partialorder %v1061, 8.507059e+37
    %v1063 = vand.u32 %v897, 2147483648
    %v1064 = vor.u32 1.1754944e-38, %v1063
    %v1065 = vsel %vm1062, %v1064, %v1060
    %v1066 = vmul.f32 1.0, %v1065
    %v1067 = vrcp.pop %v898
    %v1068 = vmul.f32 %v898, %v1067
    %v1069 = vsub.f32 1.0, %v1068
    %v1070 = vmul.f32 %v1067, %v1069
    %v1071 = vadd.f32 %v1067, %v1070
    %vm1072 = vweird.f32 %v898
    %vm1073 = vweird.f32 %v1067
    %vm1074 = vmor %vm1072, %vm1073
    %v1075 = vsel %vm1074, %v1067, %v1071
    %v1076 = vand.u32 2147483647, %v898
    %vm1077 = vcmp.eq.f32.partialorder %v1076, 8.507059e+37
    %v1078 = vand.u32 %v898, 2147483648
    %v1079 = vor.u32 1.1754944e-38, %v1078
    %v1080 = vsel %vm1077, %v1079, %v1075
    %v1081 = vmul.f32 1.0, %v1080
    %v1082 = vrcp.pop %v899
    %v1083 = vmul.f32 %v899, %v1082
    %v1084 = vsub.f32 1.0, %v1083
    %v1085 = vmul.f32 %v1082, %v1084
    %v1086 = vadd.f32 %v1082, %v1085
    %vm1087 = vweird.f32 %v899
    %vm1088 = vweird.f32 %v1082
    %vm1089 = vmor %vm1087, %vm1088
    %v1090 = vsel %vm1089, %v1082, %v1086
    %v1091 = vand.u32 2147483647, %v899
    %vm1092 = vcmp.eq.f32.partialorder %v1091, 8.507059e+37
    %v1093 = vand.u32 %v899, 2147483648
    %v1094 = vor.u32 1.1754944e-38, %v1093
    %v1095 = vsel %vm1092, %v1094, %v1090
    %v1096 = vmul.f32 1.0, %v1095
    %v1097 = vrcp.pop %v900
    %v1098 = vmul.f32 %v900, %v1097
    %v1099 = vsub.f32 1.0, %v1098
    %v1100 = vmul.f32 %v1097, %v1099
    %v1101 = vadd.f32 %v1097, %v1100
    %vm1102 = vweird.f32 %v900
    %vm1103 = vweird.f32 %v1097
    %vm1104 = vmor %vm1102, %vm1103
    %v1105 = vsel %vm1104, %v1097, %v1101
    %v1106 = vand.u32 2147483647, %v900
    %vm1107 = vcmp.eq.f32.partialorder %v1106, 8.507059e+37
    %v1108 = vand.u32 %v900, 2147483648
    %v1109 = vor.u32 1.1754944e-38, %v1108
    %v1110 = vsel %vm1107, %v1109, %v1105
    %v1111 = vmul.f32 1.0, %v1110
    %v1112 = vrcp.pop %v901
    %v1113 = vmul.f32 %v901, %v1112
    %v1114 = vsub.f32 1.0, %v1113
    %v1115 = vmul.f32 %v1112, %v1114
    %v1116 = vadd.f32 %v1112, %v1115
    %vm1117 = vweird.f32 %v901
    %vm1118 = vweird.f32 %v1112
    %vm1119 = vmor %vm1117, %vm1118
    %v1120 = vsel %vm1119, %v1112, %v1116
    %v1121 = vand.u32 2147483647, %v901
    %vm1122 = vcmp.eq.f32.partialorder %v1121, 8.507059e+37
    %v1123 = vand.u32 %v901, 2147483648
    %v1124 = vor.u32 1.1754944e-38, %v1123
    %v1125 = vsel %vm1122, %v1124, %v1120
    %v1126 = vmul.f32 1.0, %v1125
    %v1127 = vperm.slane %v160, 0
    %v1128 = vmul.f32 %v916, %v1127
    %v1129 = vmul.f32 %v931, %v1127
    %v1130 = vmul.f32 %v946, %v1127
    %v1131 = vmul.f32 %v961, %v1127
    %v1132 = vmul.f32 %v976, %v1127
    %v1133 = vmul.f32 %v991, %v1127
    %v1134 = vmul.f32 %v1006, %v1127
    %v1135 = vmul.f32 %v1021, %v1127
    %v1136 = vmul.f32 %v1036, %v1127
    %v1137 = vmul.f32 %v1051, %v1127
    %v1138 = vmul.f32 %v1066, %v1127
    %v1139 = vmul.f32 %v1081, %v1127
    %v1140 = vmul.f32 %v1096, %v1127
    %v1141 = vmul.f32 %v1111, %v1127
    %v1142 = vmul.f32 %v1126, %v1127
    %v1143 = vperm.slane %v161, 0
    %v1144 = vadd.f32 %v1128, %v1143
    %v1145 = vadd.f32 %v1129, %v1143
    %v1146 = vadd.f32 %v1130, %v1143
    %v1147 = vadd.f32 %v1131, %v1143
    %v1148 = vadd.f32 %v1132, %v1143
    %v1149 = vadd.f32 %v1133, %v1143
    %v1150 = vadd.f32 %v1134, %v1143
    %v1151 = vadd.f32 %v1135, %v1143
    %v1152 = vadd.f32 %v1136, %v1143
    %v1153 = vadd.f32 %v1137, %v1143
    %v1154 = vadd.f32 %v1138, %v1143
    %v1155 = vadd.f32 %v1139, %v1143
    %v1156 = vadd.f32 %v1140, %v1143
    %v1157 = vadd.f32 %v1141, %v1143
    %v1158 = vadd.f32 %v1142, %v1143
    %v1159 = vadd.f32 %v1144, 1.0
    %v1160 = vadd.f32 %v1145, 1.0
    %v1161 = vadd.f32 %v1146, 1.0
    %v1162 = vadd.f32 %v1147, 1.0
    %v1163 = vadd.f32 %v1148, 1.0
    %v1164 = vadd.f32 %v1149, 1.0
    %v1165 = vadd.f32 %v1150, 1.0
    %v1166 = vadd.f32 %v1151, 1.0
    %v1167 = vadd.f32 %v1152, 1.0
    %v1168 = vadd.f32 %v1153, 1.0
    %v1169 = vadd.f32 %v1154, 1.0
    %v1170 = vadd.f32 %v1155, 1.0
    %v1171 = vadd.f32 %v1156, 1.0
    %v1172 = vadd.f32 %v1157, 1.0
    %v1173 = vadd.f32 %v1158, 1.0
    %v1174 = vmul.f32 %v307, %v1159
    %v1175 = vmul.f32 %v308, %v1160
    %v1176 = vmul.f32 %v309, %v1161
    %v1177 = vmul.f32 %v310, %v1162
    %v1178 = vmul.f32 %v311, %v1163
    %v1179 = vmul.f32 %v312, %v1164
    %v1180 = vmul.f32 %v313, %v1165
    %v1181 = vmul.f32 %v314, %v1166
    %v1182 = vmul.f32 %v315, %v1167
    %v1183 = vmul.f32 %v316, %v1168
    %v1184 = vmul.f32 %v317, %v1169
    %v1185 = vmul.f32 %v318, %v1170
    %v1186 = vmul.f32 %v319, %v1171
    %v1187 = vmul.f32 %v320, %v1172
    %v1188 = vmul.f32 %v321, %v1173
    %v1189 = vld [vmem:[%s7] sm:$0xff]
    %v1190 = vld [vmem:[%s7 + $0x8] sm:$0xff]
    %v1191 = vld [vmem:[%s7 + $0x10] sm:$0xff]
    %v1192 = vld [vmem:[%s7 + $0x18] sm:$0xff]
    %v1193 = vld [vmem:[%s7 + $0x20] sm:$0x1]
    %v1194 = vld [vmem:[%s7 + $0x21] sm:$0x1]
    %v1195 = vld [vmem:[%s7 + $0x22] sm:$0x1]
    %v1196 = vld [vmem:[%s8] sm:$0xff]
    %v1197 = vld [vmem:[%s8 + $0x8] sm:$0xff]
    %v1198 = vld [vmem:[%s8 + $0x10] sm:$0xff]
    %v1199 = vld [vmem:[%s8 + $0x18] sm:$0xff]
    %v1200 = vld [vmem:[%s8 + $0x20] sm:$0x1]
    %v1201 = vperm.slane %v1193, 0
    %v1203 = vsel %vm322, %v1174, 0
    %v1206 = vsel %vm322, %v1175, 0
    %v1209 = vsel %vm322, %v1176, 0
    %v1212 = vsel %vm322, %v1177, 0
    %v1215 = vsel %vm322, %v1178, 0
    %v1218 = vsel %vm322, %v1179, 0
    %v1221 = vsel %vm322, %v1180, 0
    %v1224 = vsel %vm322, %v1181, 0
    %v1227 = vsel %vm322, %v1182, 0
    %v1230 = vsel %vm322, %v1183, 0
    %v1233 = vsel %vm322, %v1184, 0
    %v1236 = vsel %vm322, %v1185, 0
    %v1239 = vsel %vm322, %v1186, 0
    %v1242 = vsel %vm322, %v1187, 0
    %v1245 = vsel %vm322, %v1188, 0
    %1247 = vmatpush.msra.mxu0 0.0
    %1248 = vmatpush.msra.mxu0 0.0
    %1249 = vmatpush.msra.mxu0 0.0
    %1250 = vmatpush.msra.mxu0 0.0
    %1251 = vmatpush.msra.mxu0 0.0
    %1252 = vmatpush.msra.mxu0 0.0
    %1253 = vmatpush.msra.mxu0 0.0
    %1254 = vmatpush.msra.mxu0 0.0
    %1255 = vmatpush.msra.mxu0 0.0
    %1256 = vmatpush.msra.mxu0 0.0
    %1257 = vmatpush.msra.mxu0 0.0
    %1258 = vmatpush.msra.mxu0 0.0
    %1259 = vmatpush.msra.mxu0 %v1192
    %1260 = vmatpush.msra.mxu0 %v1191
    %1261 = vmatpush.msra.mxu0 %v1190
    %1262 = vmatpush.msra.mxu0 %v1189
    %1263 = vmatmul.f32.gmra.mxu0 %v1203
    %v1264 = vpop.f32.mrf.mxu0
    %v1265 = vadd.f32 %v1201, %v1264
    %1266 = vmatmul.f32.gmra.mxu0 %v1206
    %v1267 = vpop.f32.mrf.mxu0
    %v1268 = vadd.f32 %v1201, %v1267
    %1269 = vmatmul.f32.gmra.mxu0 %v1209
    %v1270 = vpop.f32.mrf.mxu0
    %v1271 = vadd.f32 %v1201, %v1270
    %1272 = vmatmul.f32.gmra.mxu0 %v1212
    %v1273 = vpop.f32.mrf.mxu0
    %v1274 = vadd.f32 %v1201, %v1273
    %1275 = vmatmul.f32.gmra.mxu0 %v1215
    %v1276 = vpop.f32.mrf.mxu0
    %v1277 = vadd.f32 %v1201, %v1276
    %1278 = vmatmul.f32.gmra.mxu0 %v1218
    %v1279 = vpop.f32.mrf.mxu0
    %v1280 = vadd.f32 %v1201, %v1279
    %1281 = vmatmul.f32.gmra.mxu0 %v1221
    %v1282 = vpop.f32.mrf.mxu0
    %v1283 = vadd.f32 %v1201, %v1282
    %1284 = vmatmul.f32.gmra.mxu0 %v1224
    %v1285 = vpop.f32.mrf.mxu0
    %v1286 = vadd.f32 %v1201, %v1285
    %1287 = vmatmul.f32.gmra.mxu0 %v1227
    %v1288 = vpop.f32.mrf.mxu0
    %v1289 = vadd.f32 %v1201, %v1288
    %1290 = vmatmul.f32.gmra.mxu0 %v1230
    %v1291 = vpop.f32.mrf.mxu0
    %v1292 = vadd.f32 %v1201, %v1291
    %1293 = vmatmul.f32.gmra.mxu0 %v1233
    %v1294 = vpop.f32.mrf.mxu0
    %v1295 = vadd.f32 %v1201, %v1294
    %1296 = vmatmul.f32.gmra.mxu0 %v1236
    %v1297 = vpop.f32.mrf.mxu0
    %v1298 = vadd.f32 %v1201, %v1297
    %1299 = vmatmul.f32.gmra.mxu0 %v1239
    %v1300 = vpop.f32.mrf.mxu0
    %v1301 = vadd.f32 %v1201, %v1300
    %1302 = vmatmul.f32.gmra.mxu0 %v1242
    %v1303 = vpop.f32.mrf.mxu0
    %v1304 = vadd.f32 %v1201, %v1303
    %1305 = vmatmul.f32.gmra.mxu0 %v1245
    %v1306 = vpop.f32.mrf.mxu0
    %v1307 = vadd.f32 %v1201, %v1306
    %1308 = vdwg.mxu0
    %vm1309 = vcmp.ge.f32.partialorder %v1265, 0.0
    %vm1310 = vcmp.ge.f32.partialorder %v1268, 0.0
    %vm1311 = vcmp.ge.f32.partialorder %v1271, 0.0
    %vm1312 = vcmp.ge.f32.partialorder %v1274, 0.0
    %vm1313 = vcmp.ge.f32.partialorder %v1277, 0.0
    %vm1314 = vcmp.ge.f32.partialorder %v1280, 0.0
    %vm1315 = vcmp.ge.f32.partialorder %v1283, 0.0
    %vm1316 = vcmp.ge.f32.partialorder %v1286, 0.0
    %vm1317 = vcmp.ge.f32.partialorder %v1289, 0.0
    %vm1318 = vcmp.ge.f32.partialorder %v1292, 0.0
    %vm1319 = vcmp.ge.f32.partialorder %v1295, 0.0
    %vm1320 = vcmp.ge.f32.partialorder %v1298, 0.0
    %vm1321 = vcmp.ge.f32.partialorder %v1301, 0.0
    %vm1322 = vcmp.ge.f32.partialorder %v1304, 0.0
    %vm1323 = vcmp.ge.f32.partialorder %v1307, 0.0
    %v1324 = vmul.f32 %v1265, 0.01
    %v1325 = vmul.f32 %v1268, 0.01
    %v1326 = vmul.f32 %v1271, 0.01
    %v1327 = vmul.f32 %v1274, 0.01
    %v1328 = vmul.f32 %v1277, 0.01
    %v1329 = vmul.f32 %v1280, 0.01
    %v1330 = vmul.f32 %v1283, 0.01
    %v1331 = vmul.f32 %v1286, 0.01
    %v1332 = vmul.f32 %v1289, 0.01
    %v1333 = vmul.f32 %v1292, 0.01
    %v1334 = vmul.f32 %v1295, 0.01
    %v1335 = vmul.f32 %v1298, 0.01
    %v1336 = vmul.f32 %v1301, 0.01
    %v1337 = vmul.f32 %v1304, 0.01
    %v1338 = vmul.f32 %v1307, 0.01
    %v1339 = vsel %vm1309, %v1265, %v1324
    %v1340 = vsel %vm1310, %v1268, %v1325
    %v1341 = vsel %vm1311, %v1271, %v1326
    %v1342 = vsel %vm1312, %v1274, %v1327
    %v1343 = vsel %vm1313, %v1277, %v1328
    %v1344 = vsel %vm1314, %v1280, %v1329
    %v1345 = vsel %vm1315, %v1283, %v1330
    %v1346 = vsel %vm1316, %v1286, %v1331
    %v1347 = vsel %vm1317, %v1289, %v1332
    %v1348 = vsel %vm1318, %v1292, %v1333
    %v1349 = vsel %vm1319, %v1295, %v1334
    %v1350 = vsel %vm1320, %v1298, %v1335
    %v1351 = vsel %vm1321, %v1301, %v1336
    %v1352 = vsel %vm1322, %v1304, %v1337
    %v1353 = vsel %vm1323, %v1307, %v1338
    %v1354 = vsel %vm322, %v1339, 0.0
    %1355 = vadd.xlane.f32.xlu0 %v1354
    %v1356 = vpop.xlane.xlu0 %1355
    %v1357 = vsel %vm322, %v1340, 0.0
    %1358 = vadd.xlane.f32.xlu0 %v1357
    %v1359 = vpop.xlane.xlu0 %1358
    %v1360 = vsel %vm322, %v1341, 0.0
    %1361 = vadd.xlane.f32.xlu0 %v1360
    %v1362 = vpop.xlane.xlu0 %1361
    %v1363 = vsel %vm322, %v1342, 0.0
    %1364 = vadd.xlane.f32.xlu0 %v1363
    %v1365 = vpop.xlane.xlu0 %1364
    %v1366 = vsel %vm322, %v1343, 0.0
    %1367 = vadd.xlane.f32.xlu0 %v1366
    %v1368 = vpop.xlane.xlu0 %1367
    %v1369 = vsel %vm322, %v1344, 0.0
    %1370 = vadd.xlane.f32.xlu0 %v1369
    %v1371 = vpop.xlane.xlu0 %1370
    %v1372 = vsel %vm322, %v1345, 0.0
    %1373 = vadd.xlane.f32.xlu0 %v1372
    %v1374 = vpop.xlane.xlu0 %1373
    %v1375 = vsel %vm322, %v1346, 0.0
    %1376 = vadd.xlane.f32.xlu0 %v1375
    %v1377 = vpop.xlane.xlu0 %1376
    %v1378 = vsel %vm322, %v1347, 0.0
    %1379 = vadd.xlane.f32.xlu0 %v1378
    %v1380 = vpop.xlane.xlu0 %1379
    %v1381 = vsel %vm322, %v1348, 0.0
    %1382 = vadd.xlane.f32.xlu0 %v1381
    %v1383 = vpop.xlane.xlu0 %1382
    %v1384 = vsel %vm322, %v1349, 0.0
    %1385 = vadd.xlane.f32.xlu0 %v1384
    %v1386 = vpop.xlane.xlu0 %1385
    %v1387 = vsel %vm322, %v1350, 0.0
    %1388 = vadd.xlane.f32.xlu0 %v1387
    %v1389 = vpop.xlane.xlu0 %1388
    %v1390 = vsel %vm322, %v1351, 0.0
    %1391 = vadd.xlane.f32.xlu0 %v1390
    %v1392 = vpop.xlane.xlu0 %1391
    %v1393 = vsel %vm322, %v1352, 0.0
    %1394 = vadd.xlane.f32.xlu0 %v1393
    %v1395 = vpop.xlane.xlu0 %1394
    %v1396 = vsel %vm322, %v1353, 0.0
    %1397 = vadd.xlane.f32.xlu0 %v1396
    %v1398 = vpop.xlane.xlu0 %1397
    %v1399 = vmul.f32 %v1356, %v374
    %v1400 = vmul.f32 %v1359, %v374
    %v1401 = vmul.f32 %v1362, %v374
    %v1402 = vmul.f32 %v1365, %v374
    %v1403 = vmul.f32 %v1368, %v374
    %v1404 = vmul.f32 %v1371, %v374
    %v1405 = vmul.f32 %v1374, %v374
    %v1406 = vmul.f32 %v1377, %v374
    %v1407 = vmul.f32 %v1380, %v374
    %v1408 = vmul.f32 %v1383, %v374
    %v1409 = vmul.f32 %v1386, %v374
    %v1410 = vmul.f32 %v1389, %v374
    %v1411 = vmul.f32 %v1392, %v374
    %v1412 = vmul.f32 %v1395, %v374
    %v1413 = vmul.f32 %v1398, %v374
    %v1414 = vmul.f32 %v127, %v1399
    %v1415 = vmul.f32 %v128, %v1400
    %v1416 = vmul.f32 %v129, %v1401
    %v1417 = vmul.f32 %v130, %v1402
    %v1418 = vmul.f32 %v131, %v1403
    %v1419 = vmul.f32 %v132, %v1404
    %v1420 = vmul.f32 %v133, %v1405
    %v1421 = vmul.f32 %v134, %v1406
    %v1422 = vmul.f32 %v135, %v1407
    %v1423 = vmul.f32 %v136, %v1408
    %v1424 = vmul.f32 %v137, %v1409
    %v1425 = vmul.f32 %v138, %v1410
    %v1426 = vmul.f32 %v139, %v1411
    %v1427 = vmul.f32 %v140, %v1412
    %v1428 = vmul.f32 %v141, %v1413
    %1429 = vmatpush.msra.mxu0 0.0
    %1430 = vmatpush.msra.mxu0 %v1428
    %1431 = vmatpush.msra.mxu0 %v1427
    %1432 = vmatpush.msra.mxu0 %v1426
    %1433 = vmatpush.msra.mxu0 %v1425
    %1434 = vmatpush.msra.mxu0 %v1424
    %1435 = vmatpush.msra.mxu0 %v1423
    %1436 = vmatpush.msra.mxu0 %v1422
    %1437 = vmatpush.msra.mxu0 %v1421
    %1438 = vmatpush.msra.mxu0 %v1420
    %1439 = vmatpush.msra.mxu0 %v1419
    %1440 = vmatpush.msra.mxu0 %v1418
    %1441 = vmatpush.msra.mxu0 %v1417
    %1442 = vmatpush.msra.mxu0 %v1416
    %1443 = vmatpush.msra.mxu0 %v1415
    %1444 = vmatpush.msra.mxu0 %v1414
    %1445 = vmatmul.f32.gmra.mxu0 %v407
    %v1446 = vpop.f32.mrf.mxu0
    %v1447 = vadd.f32 0.0, %v1446
    %1448 = vmatmul.f32.gmra.mxu0 %v410
    %v1449 = vpop.f32.mrf.mxu0
    %v1450 = vadd.f32 0.0, %v1449
    %1451 = vdwg.mxu0
    %1452 = vxpose.xlu0.b32.start [1/16] %v1447, 128
    %1453 = vxpose.xlu0.b32.cont [2/16] %v1450, 128
    %1454 = vxpose.xlu0.b32.cont [3/16] 0.0, 128
    %1455 = vxpose.xlu0.b32.cont [4/16] 0.0, 128
    %1456 = vxpose.xlu0.b32.cont [5/16] 0.0, 128
    %1457 = vxpose.xlu0.b32.cont [6/16] 0.0, 128
    %1458 = vxpose.xlu0.b32.cont [7/16] 0.0, 128
    %1459 = vxpose.xlu0.b32.cont [8/16] 0.0, 128
    %1460 = vxpose.xlu0.b32.cont [9/16] 0.0, 128
    %1461 = vxpose.xlu0.b32.cont [10/16] 0.0, 128
    %1462 = vxpose.xlu0.b32.cont [11/16] 0.0, 128
    %1463 = vxpose.xlu0.b32.cont [12/16] 0.0, 128
    %1464 = vxpose.xlu0.b32.cont [13/16] 0.0, 128
    %1465 = vxpose.xlu0.b32.cont [14/16] 0.0, 128
    %1466 = vxpose.xlu0.b32.cont [15/16] 0.0, 128
    %1467 = vxpose.xlu0.b32.end [16/16] 0.0, 128
    %v1468 = vpop.trf.xlu0
    %v1469 = vpop.trf.xlu0
    %v1470 = vpop.trf.xlu0
    %v1471 = vpop.trf.xlu0
    %v1472 = vpop.trf.xlu0
    %v1473 = vpop.trf.xlu0
    %v1474 = vpop.trf.xlu0
    %v1475 = vpop.trf.xlu0
    %v1476 = vpop.trf.xlu0
    %v1477 = vpop.trf.xlu0
    %v1478 = vpop.trf.xlu0
    %v1479 = vpop.trf.xlu0
    %v1480 = vpop.trf.xlu0
    %v1481 = vpop.trf.xlu0
    %v1482 = vpop.trf.xlu0
    %v1483 = vpop.trf.xlu0
    %v1484 = vadd.f32 %v1447, %v1468
    %v1485 = vadd.f32 %v1450, %v1469
    %v1486 = vadd.f32 %v1484, %v155
    %v1487 = vadd.f32 %v1485, %v156
    %v1488 = vsel %vm471, %v1486, 0.0
    %1489 = vadd.xlane.f32.xlu0 %v1488
    %v1490 = vpop.xlane.xlu0 %1489
    %v1491 = vsel %vm471, %v1487, 0.0
    %1492 = vadd.xlane.f32.xlu0 %v1491
    %v1493 = vpop.xlane.xlu0 %1492
    %v1494 = vrsqrt.pop %v1490
    %v1495 = vmul.f32 %v1494, %v1490
    %v1496 = vmul.f32 %v1495, %v1494
    %v1497 = vmul.f32 0.5, %v1496
    %v1498 = vsub.f32 1.5, %v1497
    %v1499 = vmul.f32 %v1494, %v1498
    %vm1500 = vweird.f32 %v1490
    %vm1501 = vweird.f32 %v1494
    %vm1502 = vmor %vm1500, %vm1501
    %v1503 = vsel %vm1502, %v1494, %v1499
    %v1504 = vrsqrt.pop %v1493
    %v1505 = vmul.f32 %v1504, %v1493
    %v1506 = vmul.f32 %v1505, %v1504
    %v1507 = vmul.f32 0.5, %v1506
    %v1508 = vsub.f32 1.5, %v1507
    %v1509 = vmul.f32 %v1504, %v1508
    %vm1510 = vweird.f32 %v1493
    %vm1511 = vweird.f32 %v1504
    %vm1512 = vmor %vm1510, %vm1511
    %v1513 = vsel %vm1512, %v1504, %v1509
    %v1514 = vadd.f32 %v1488, %v1491
    %v1515 = vrot.slane %v1514, 4
    %v1516 = vadd.f32 %v1514, %v1515
    %v1517 = vrot.slane %v1516, 2
    %v1518 = vadd.f32 %v1516, %v1517
    %v1519 = vrot.slane %v1518, 1
    %v1520 = vadd.f32 %v1518, %v1519
    %v1521 = vrsqrt.pop %v1520
    %v1522 = vmul.f32 %v1521, %v1520
    %v1523 = vmul.f32 %v1522, %v1521
    %v1524 = vmul.f32 0.5, %v1523
    %v1525 = vsub.f32 1.5, %v1524
    %v1526 = vmul.f32 %v1521, %v1525
    %vm1527 = vweird.f32 %v1520
    %vm1528 = vweird.f32 %v1521
    %vm1529 = vmor %vm1527, %vm1528
    %v1530 = vsel %vm1529, %v1521, %v1526
    %v1531 = vmul.f32 %v1486, %v1503
    %v1532 = vmul.f32 %v1487, %v1513
    %v1533 = vmul.f32 %v1531, %v1530
    %v1534 = vmul.f32 %v1532, %v1530
    %v1536 = vsel %vm322, %v583, 0
    %v1539 = vsel %vm322, %v584, 0
    %1541 = vmatpush.msra.mxu0 0.0
    %1542 = vmatpush.msra.mxu0 0.0
    %1543 = vmatpush.msra.mxu0 0.0
    %1544 = vmatpush.msra.mxu0 0.0
    %1545 = vmatpush.msra.mxu0 0.0
    %1546 = vmatpush.msra.mxu0 0.0
    %1547 = vmatpush.msra.mxu0 0.0
    %1548 = vmatpush.msra.mxu0 0.0
    %1549 = vmatpush.msra.mxu0 0.0
    %1550 = vmatpush.msra.mxu0 0.0
    %1551 = vmatpush.msra.mxu0 0.0
    %1552 = vmatpush.msra.mxu0 0.0
    %1553 = vmatpush.msra.mxu0 %v1199
    %1554 = vmatpush.msra.mxu0 %v1198
    %1555 = vmatpush.msra.mxu0 %v1197
    %1556 = vmatpush.msra.mxu0 %v1196
    %1557 = vmatmul.f32.gmra.mxu0 %v1536
    %v1558 = vpop.f32.mrf.mxu0
    %v1559 = vadd.f32 0.0, %v1558
    %1560 = vmatmul.f32.gmra.mxu0 %v1539
    %v1561 = vpop.f32.mrf.mxu0
    %v1562 = vadd.f32 0.0, %v1561
    %1563 = vdwg.mxu0
    %v1564 = vperm.slane %v1200, 0
    %v1566 = vsel %vm471, %v1533, 0
    %v1569 = vsel %vm471, %v1534, 0
    %1571 = vmatpush.msra.mxu0 0.0
    %1572 = vmatpush.msra.mxu0 0.0
    %1573 = vmatpush.msra.mxu0 0.0
    %1574 = vmatpush.msra.mxu0 0.0
    %1575 = vmatpush.msra.mxu0 0.0
    %1576 = vmatpush.msra.mxu0 0.0
    %1577 = vmatpush.msra.mxu0 0.0
    %1578 = vmatpush.msra.mxu0 0.0
    %1579 = vmatpush.msra.mxu0 0.0
    %1580 = vmatpush.msra.mxu0 0.0
    %1581 = vmatpush.msra.mxu0 0.0
    %1582 = vmatpush.msra.mxu0 0.0
    %1583 = vmatpush.msra.mxu0 0.0
    %1584 = vmatpush.msra.mxu0 0.0
    %1585 = vmatpush.msra.mxu0 %v1562
    %1586 = vmatpush.msra.mxu0 %v1559
    %1587 = vmatmul.f32.gmra.mxu0 %v1566
    %v1588 = vpop.f32.mrf.mxu0
    %v1589 = vadd.f32 %v1564, %v1588
    %1590 = vmatmul.f32.gmra.mxu0 %v1569
    %v1591 = vpop.f32.mrf.mxu0
    %v1592 = vadd.f32 %v1564, %v1591
    %1593 = vdwg.mxu0
    %vm1594 = vcmp.ge.f32.partialorder %v1589, 0.0
    %vm1595 = vcmp.ge.f32.partialorder %v1592, 0.0
    %v1596 = vmul.f32 %v1589, 0.01
    %v1597 = vmul.f32 %v1592, 0.01
    %v1598 = vsel %vm1594, %v1589, %v1596
    %v1599 = vsel %vm1595, %v1592, %v1597
    %1600 = vmatpush.msra.mxu0 0.0
    %1601 = vmatpush.msra.mxu0 0.0
    %1602 = vmatpush.msra.mxu0 0.0
    %1603 = vmatpush.msra.mxu0 0.0
    %1604 = vmatpush.msra.mxu0 0.0
    %1605 = vmatpush.msra.mxu0 0.0
    %1606 = vmatpush.msra.mxu0 0.0
    %1607 = vmatpush.msra.mxu0 0.0
    %1608 = vmatpush.msra.mxu0 0.0
    %1609 = vmatpush.msra.mxu0 0.0
    %1610 = vmatpush.msra.mxu0 0.0
    %1611 = vmatpush.msra.mxu0 0.0
    %1612 = vmatpush.msra.mxu0 0.0
    %1613 = vmatpush.msra.mxu0 0.0
    %1614 = vmatpush.msra.mxu0 %v1599
    %1615 = vmatpush.msra.mxu0 %v1598
    %1616 = vmatmul.f32.gmra.mxu0 %v586
    %v1617 = vpop.f32.mrf.mxu0
    %v1618 = vadd.f32 0.0, %v1617
    %1619 = vmatmul.f32.gmra.mxu0 %v589
    %v1620 = vpop.f32.mrf.mxu0
    %v1621 = vadd.f32 0.0, %v1620
    %1622 = vmatmul.f32.gmra.mxu0 %v592
    %v1623 = vpop.f32.mrf.mxu0
    %v1624 = vadd.f32 0.0, %v1623
    %1625 = vmatmul.f32.gmra.mxu0 %v595
    %v1626 = vpop.f32.mrf.mxu0
    %v1627 = vadd.f32 0.0, %v1626
    %1628 = vmatmul.f32.gmra.mxu0 %v598
    %v1629 = vpop.f32.mrf.mxu0
    %v1630 = vadd.f32 0.0, %v1629
    %1631 = vmatmul.f32.gmra.mxu0 %v601
    %v1632 = vpop.f32.mrf.mxu0
    %v1633 = vadd.f32 0.0, %v1632
    %1634 = vmatmul.f32.gmra.mxu0 %v604
    %v1635 = vpop.f32.mrf.mxu0
    %v1636 = vadd.f32 0.0, %v1635
    %1637 = vmatmul.f32.gmra.mxu0 %v607
    %v1638 = vpop.f32.mrf.mxu0
    %v1639 = vadd.f32 0.0, %v1638
    %1640 = vmatmul.f32.gmra.mxu0 %v610
    %v1641 = vpop.f32.mrf.mxu0
    %v1642 = vadd.f32 0.0, %v1641
    %1643 = vmatmul.f32.gmra.mxu0 %v613
    %v1644 = vpop.f32.mrf.mxu0
    %v1645 = vadd.f32 0.0, %v1644
    %1646 = vmatmul.f32.gmra.mxu0 %v616
    %v1647 = vpop.f32.mrf.mxu0
    %v1648 = vadd.f32 0.0, %v1647
    %1649 = vmatmul.f32.gmra.mxu0 %v619
    %v1650 = vpop.f32.mrf.mxu0
    %v1651 = vadd.f32 0.0, %v1650
    %1652 = vmatmul.f32.gmra.mxu0 %v622
    %v1653 = vpop.f32.mrf.mxu0
    %v1654 = vadd.f32 0.0, %v1653
    %1655 = vmatmul.f32.gmra.mxu0 %v625
    %v1656 = vpop.f32.mrf.mxu0
    %v1657 = vadd.f32 0.0, %v1656
    %1658 = vmatmul.f32.gmra.mxu0 %v628
    %v1659 = vpop.f32.mrf.mxu0
    %v1660 = vadd.f32 0.0, %v1659
    %1661 = vmatmul.f32.gmra.mxu0 %v631
    %v1662 = vpop.f32.mrf.mxu0
    %v1663 = vadd.f32 0.0, %v1662
    %1664 = vmatmul.f32.gmra.mxu0 %v634
    %v1665 = vpop.f32.mrf.mxu0
    %v1666 = vadd.f32 0.0, %v1665
    %1667 = vmatmul.f32.gmra.mxu0 %v637
    %v1668 = vpop.f32.mrf.mxu0
    %v1669 = vadd.f32 0.0, %v1668
    %1670 = vmatmul.f32.gmra.mxu0 %v640
    %v1671 = vpop.f32.mrf.mxu0
    %v1672 = vadd.f32 0.0, %v1671
    %1673 = vmatmul.f32.gmra.mxu0 %v643
    %v1674 = vpop.f32.mrf.mxu0
    %v1675 = vadd.f32 0.0, %v1674
    %1676 = vmatmul.f32.gmra.mxu0 %v646
    %v1677 = vpop.f32.mrf.mxu0
    %v1678 = vadd.f32 0.0, %v1677
    %1679 = vmatmul.f32.gmra.mxu0 %v649
    %v1680 = vpop.f32.mrf.mxu0
    %v1681 = vadd.f32 0.0, %v1680
    %1682 = vmatmul.f32.gmra.mxu0 %v652
    %v1683 = vpop.f32.mrf.mxu0
    %v1684 = vadd.f32 0.0, %v1683
    %1685 = vmatmul.f32.gmra.mxu0 %v655
    %v1686 = vpop.f32.mrf.mxu0
    %v1687 = vadd.f32 0.0, %v1686
    %1688 = vmatmul.f32.gmra.mxu0 %v658
    %v1689 = vpop.f32.mrf.mxu0
    %v1690 = vadd.f32 0.0, %v1689
    %1691 = vmatmul.f32.gmra.mxu0 %v661
    %v1692 = vpop.f32.mrf.mxu0
    %v1693 = vadd.f32 0.0, %v1692
    %1694 = vmatmul.f32.gmra.mxu0 %v664
    %v1695 = vpop.f32.mrf.mxu0
    %v1696 = vadd.f32 0.0, %v1695
    %1697 = vmatmul.f32.gmra.mxu0 %v667
    %v1698 = vpop.f32.mrf.mxu0
    %v1699 = vadd.f32 0.0, %v1698
    %1700 = vmatmul.f32.gmra.mxu0 %v670
    %v1701 = vpop.f32.mrf.mxu0
    %v1702 = vadd.f32 0.0, %v1701
    %1703 = vmatmul.f32.gmra.mxu0 %v673
    %v1704 = vpop.f32.mrf.mxu0
    %v1705 = vadd.f32 0.0, %v1704
    %1706 = vdwg.mxu0
    %v1707 = vmul.f32 %v1618, %v1663
    %v1708 = vmul.f32 %v1621, %v1666
    %v1709 = vmul.f32 %v1624, %v1669
    %v1710 = vmul.f32 %v1627, %v1672
    %v1711 = vmul.f32 %v1630, %v1675
    %v1712 = vmul.f32 %v1633, %v1678
    %v1713 = vmul.f32 %v1636, %v1681
    %v1714 = vmul.f32 %v1639, %v1684
    %v1715 = vmul.f32 %v1642, %v1687
    %v1716 = vmul.f32 %v1645, %v1690
    %v1717 = vmul.f32 %v1648, %v1693
    %v1718 = vmul.f32 %v1651, %v1696
    %v1719 = vmul.f32 %v1654, %v1699
    %v1720 = vmul.f32 %v1657, %v1702
    %v1721 = vmul.f32 %v1660, %v1705
    %v1722 = vsel %vm322, %v1707, 0.0
    %1723 = vadd.xlane.f32.xlu0 %v1722
    %v1724 = vpop.xlane.xlu0 %1723
    %v1725 = vsel %vm322, %v1708, 0.0
    %1726 = vadd.xlane.f32.xlu0 %v1725
    %v1727 = vpop.xlane.xlu0 %1726
    %v1728 = vsel %vm322, %v1709, 0.0
    %1729 = vadd.xlane.f32.xlu0 %v1728
    %v1730 = vpop.xlane.xlu0 %1729
    %v1731 = vsel %vm322, %v1710, 0.0
    %1732 = vadd.xlane.f32.xlu0 %v1731
    %v1733 = vpop.xlane.xlu0 %1732
    %v1734 = vsel %vm322, %v1711, 0.0
    %1735 = vadd.xlane.f32.xlu0 %v1734
    %v1736 = vpop.xlane.xlu0 %1735
    %v1737 = vsel %vm322, %v1712, 0.0
    %1738 = vadd.xlane.f32.xlu0 %v1737
    %v1739 = vpop.xlane.xlu0 %1738
    %v1740 = vsel %vm322, %v1713, 0.0
    %1741 = vadd.xlane.f32.xlu0 %v1740
    %v1742 = vpop.xlane.xlu0 %1741
    %v1743 = vsel %vm322, %v1714, 0.0
    %1744 = vadd.xlane.f32.xlu0 %v1743
    %v1745 = vpop.xlane.xlu0 %1744
    %v1746 = vsel %vm322, %v1715, 0.0
    %1747 = vadd.xlane.f32.xlu0 %v1746
    %v1748 = vpop.xlane.xlu0 %1747
    %v1749 = vsel %vm322, %v1716, 0.0
    %1750 = vadd.xlane.f32.xlu0 %v1749
    %v1751 = vpop.xlane.xlu0 %1750
    %v1752 = vsel %vm322, %v1717, 0.0
    %1753 = vadd.xlane.f32.xlu0 %v1752
    %v1754 = vpop.xlane.xlu0 %1753
    %v1755 = vsel %vm322, %v1718, 0.0
    %1756 = vadd.xlane.f32.xlu0 %v1755
    %v1757 = vpop.xlane.xlu0 %1756
    %v1758 = vsel %vm322, %v1719, 0.0
    %1759 = vadd.xlane.f32.xlu0 %v1758
    %v1760 = vpop.xlane.xlu0 %1759
    %v1761 = vsel %vm322, %v1720, 0.0
    %1762 = vadd.xlane.f32.xlu0 %v1761
    %v1763 = vpop.xlane.xlu0 %1762
    %v1764 = vsel %vm322, %v1721, 0.0
    %1765 = vadd.xlane.f32.xlu0 %v1764
    %v1766 = vpop.xlane.xlu0 %1765
    %v1767 = vxor.u32 %v1724, 2147483648
    %v1768 = vxor.u32 %v1727, 2147483648
    %v1769 = vxor.u32 %v1730, 2147483648
    %v1770 = vxor.u32 %v1733, 2147483648
    %v1771 = vxor.u32 %v1736, 2147483648
    %v1772 = vxor.u32 %v1739, 2147483648
    %v1773 = vxor.u32 %v1742, 2147483648
    %v1774 = vxor.u32 %v1745, 2147483648
    %v1775 = vxor.u32 %v1748, 2147483648
    %v1776 = vxor.u32 %v1751, 2147483648
    %v1777 = vxor.u32 %v1754, 2147483648
    %v1778 = vxor.u32 %v1757, 2147483648
    %v1779 = vxor.u32 %v1760, 2147483648
    %v1780 = vxor.u32 %v1763, 2147483648
    %v1781 = vxor.u32 %v1766, 2147483648
    %v1782 = vmul.f32 %v1767, 1.442695
    %v1783 = vpow.pop %v1782
    %v1784 = vmul.f32 %v1768, 1.442695
    %v1785 = vpow.pop %v1784
    %v1786 = vmul.f32 %v1769, 1.442695
    %v1787 = vpow.pop %v1786
    %v1788 = vmul.f32 %v1770, 1.442695
    %v1789 = vpow.pop %v1788
    %v1790 = vmul.f32 %v1771, 1.442695
    %v1791 = vpow.pop %v1790
    %v1792 = vmul.f32 %v1772, 1.442695
    %v1793 = vpow.pop %v1792
    %v1794 = vmul.f32 %v1773, 1.442695
    %v1795 = vpow.pop %v1794
    %v1796 = vmul.f32 %v1774, 1.442695
    %v1797 = vpow.pop %v1796
    %v1798 = vmul.f32 %v1775, 1.442695
    %v1799 = vpow.pop %v1798
    %v1800 = vmul.f32 %v1776, 1.442695
    %v1801 = vpow.pop %v1800
    %v1802 = vmul.f32 %v1777, 1.442695
    %v1803 = vpow.pop %v1802
    %v1804 = vmul.f32 %v1778, 1.442695
    %v1805 = vpow.pop %v1804
    %v1806 = vmul.f32 %v1779, 1.442695
    %v1807 = vpow.pop %v1806
    %v1808 = vmul.f32 %v1780, 1.442695
    %v1809 = vpow.pop %v1808
    %v1810 = vmul.f32 %v1781, 1.442695
    %v1811 = vpow.pop %v1810
    %v1812 = vadd.f32 %v1783, 1.0
    %v1813 = vadd.f32 %v1785, 1.0
    %v1814 = vadd.f32 %v1787, 1.0
    %v1815 = vadd.f32 %v1789, 1.0
    %v1816 = vadd.f32 %v1791, 1.0
    %v1817 = vadd.f32 %v1793, 1.0
    %v1818 = vadd.f32 %v1795, 1.0
    %v1819 = vadd.f32 %v1797, 1.0
    %v1820 = vadd.f32 %v1799, 1.0
    %v1821 = vadd.f32 %v1801, 1.0
    %v1822 = vadd.f32 %v1803, 1.0
    %v1823 = vadd.f32 %v1805, 1.0
    %v1824 = vadd.f32 %v1807, 1.0
    %v1825 = vadd.f32 %v1809, 1.0
    %v1826 = vadd.f32 %v1811, 1.0
    %v1827 = vrcp.pop %v1812
    %v1828 = vmul.f32 %v1812, %v1827
    %v1829 = vsub.f32 1.0, %v1828
    %v1830 = vmul.f32 %v1827, %v1829
    %v1831 = vadd.f32 %v1827, %v1830
    %vm1832 = vweird.f32 %v1812
    %vm1833 = vweird.f32 %v1827
    %vm1834 = vmor %vm1832, %vm1833
    %v1835 = vsel %vm1834, %v1827, %v1831
    %v1836 = vand.u32 2147483647, %v1812
    %vm1837 = vcmp.eq.f32.partialorder %v1836, 8.507059e+37
    %v1838 = vand.u32 %v1812, 2147483648
    %v1839 = vor.u32 1.1754944e-38, %v1838
    %v1840 = vsel %vm1837, %v1839, %v1835
    %v1841 = vmul.f32 1.0, %v1840
    %v1842 = vrcp.pop %v1813
    %v1843 = vmul.f32 %v1813, %v1842
    %v1844 = vsub.f32 1.0, %v1843
    %v1845 = vmul.f32 %v1842, %v1844
    %v1846 = vadd.f32 %v1842, %v1845
    %vm1847 = vweird.f32 %v1813
    %vm1848 = vweird.f32 %v1842
    %vm1849 = vmor %vm1847, %vm1848
    %v1850 = vsel %vm1849, %v1842, %v1846
    %v1851 = vand.u32 2147483647, %v1813
    %vm1852 = vcmp.eq.f32.partialorder %v1851, 8.507059e+37
    %v1853 = vand.u32 %v1813, 2147483648
    %v1854 = vor.u32 1.1754944e-38, %v1853
    %v1855 = vsel %vm1852, %v1854, %v1850
    %v1856 = vmul.f32 1.0, %v1855
    %v1857 = vrcp.pop %v1814
    %v1858 = vmul.f32 %v1814, %v1857
    %v1859 = vsub.f32 1.0, %v1858
    %v1860 = vmul.f32 %v1857, %v1859
    %v1861 = vadd.f32 %v1857, %v1860
    %vm1862 = vweird.f32 %v1814
    %vm1863 = vweird.f32 %v1857
    %vm1864 = vmor %vm1862, %vm1863
    %v1865 = vsel %vm1864, %v1857, %v1861
    %v1866 = vand.u32 2147483647, %v1814
    %vm1867 = vcmp.eq.f32.partialorder %v1866, 8.507059e+37
    %v1868 = vand.u32 %v1814, 2147483648
    %v1869 = vor.u32 1.1754944e-38, %v1868
    %v1870 = vsel %vm1867, %v1869, %v1865
    %v1871 = vmul.f32 1.0, %v1870
    %v1872 = vrcp.pop %v1815
    %v1873 = vmul.f32 %v1815, %v1872
    %v1874 = vsub.f32 1.0, %v1873
    %v1875 = vmul.f32 %v1872, %v1874
    %v1876 = vadd.f32 %v1872, %v1875
    %vm1877 = vweird.f32 %v1815
    %vm1878 = vweird.f32 %v1872
    %vm1879 = vmor %vm1877, %vm1878
    %v1880 = vsel %vm1879, %v1872, %v1876
    %v1881 = vand.u32 2147483647, %v1815
    %vm1882 = vcmp.eq.f32.partialorder %v1881, 8.507059e+37
    %v1883 = vand.u32 %v1815, 2147483648
    %v1884 = vor.u32 1.1754944e-38, %v1883
    %v1885 = vsel %vm1882, %v1884, %v1880
    %v1886 = vmul.f32 1.0, %v1885
    %v1887 = vrcp.pop %v1816
    %v1888 = vmul.f32 %v1816, %v1887
    %v1889 = vsub.f32 1.0, %v1888
    %v1890 = vmul.f32 %v1887, %v1889
    %v1891 = vadd.f32 %v1887, %v1890
    %vm1892 = vweird.f32 %v1816
    %vm1893 = vweird.f32 %v1887
    %vm1894 = vmor %vm1892, %vm1893
    %v1895 = vsel %vm1894, %v1887, %v1891
    %v1896 = vand.u32 2147483647, %v1816
    %vm1897 = vcmp.eq.f32.partialorder %v1896, 8.507059e+37
    %v1898 = vand.u32 %v1816, 2147483648
    %v1899 = vor.u32 1.1754944e-38, %v1898
    %v1900 = vsel %vm1897, %v1899, %v1895
    %v1901 = vmul.f32 1.0, %v1900
    %v1902 = vrcp.pop %v1817
    %v1903 = vmul.f32 %v1817, %v1902
    %v1904 = vsub.f32 1.0, %v1903
    %v1905 = vmul.f32 %v1902, %v1904
    %v1906 = vadd.f32 %v1902, %v1905
    %vm1907 = vweird.f32 %v1817
    %vm1908 = vweird.f32 %v1902
    %vm1909 = vmor %vm1907, %vm1908
    %v1910 = vsel %vm1909, %v1902, %v1906
    %v1911 = vand.u32 2147483647, %v1817
    %vm1912 = vcmp.eq.f32.partialorder %v1911, 8.507059e+37
    %v1913 = vand.u32 %v1817, 2147483648
    %v1914 = vor.u32 1.1754944e-38, %v1913
    %v1915 = vsel %vm1912, %v1914, %v1910
    %v1916 = vmul.f32 1.0, %v1915
    %v1917 = vrcp.pop %v1818
    %v1918 = vmul.f32 %v1818, %v1917
    %v1919 = vsub.f32 1.0, %v1918
    %v1920 = vmul.f32 %v1917, %v1919
    %v1921 = vadd.f32 %v1917, %v1920
    %vm1922 = vweird.f32 %v1818
    %vm1923 = vweird.f32 %v1917
    %vm1924 = vmor %vm1922, %vm1923
    %v1925 = vsel %vm1924, %v1917, %v1921
    %v1926 = vand.u32 2147483647, %v1818
    %vm1927 = vcmp.eq.f32.partialorder %v1926, 8.507059e+37
    %v1928 = vand.u32 %v1818, 2147483648
    %v1929 = vor.u32 1.1754944e-38, %v1928
    %v1930 = vsel %vm1927, %v1929, %v1925
    %v1931 = vmul.f32 1.0, %v1930
    %v1932 = vrcp.pop %v1819
    %v1933 = vmul.f32 %v1819, %v1932
    %v1934 = vsub.f32 1.0, %v1933
    %v1935 = vmul.f32 %v1932, %v1934
    %v1936 = vadd.f32 %v1932, %v1935
    %vm1937 = vweird.f32 %v1819
    %vm1938 = vweird.f32 %v1932
    %vm1939 = vmor %vm1937, %vm1938
    %v1940 = vsel %vm1939, %v1932, %v1936
    %v1941 = vand.u32 2147483647, %v1819
    %vm1942 = vcmp.eq.f32.partialorder %v1941, 8.507059e+37
    %v1943 = vand.u32 %v1819, 2147483648
    %v1944 = vor.u32 1.1754944e-38, %v1943
    %v1945 = vsel %vm1942, %v1944, %v1940
    %v1946 = vmul.f32 1.0, %v1945
    %v1947 = vrcp.pop %v1820
    %v1948 = vmul.f32 %v1820, %v1947
    %v1949 = vsub.f32 1.0, %v1948
    %v1950 = vmul.f32 %v1947, %v1949
    %v1951 = vadd.f32 %v1947, %v1950
    %vm1952 = vweird.f32 %v1820
    %vm1953 = vweird.f32 %v1947
    %vm1954 = vmor %vm1952, %vm1953
    %v1955 = vsel %vm1954, %v1947, %v1951
    %v1956 = vand.u32 2147483647, %v1820
    %vm1957 = vcmp.eq.f32.partialorder %v1956, 8.507059e+37
    %v1958 = vand.u32 %v1820, 2147483648
    %v1959 = vor.u32 1.1754944e-38, %v1958
    %v1960 = vsel %vm1957, %v1959, %v1955
    %v1961 = vmul.f32 1.0, %v1960
    %v1962 = vrcp.pop %v1821
    %v1963 = vmul.f32 %v1821, %v1962
    %v1964 = vsub.f32 1.0, %v1963
    %v1965 = vmul.f32 %v1962, %v1964
    %v1966 = vadd.f32 %v1962, %v1965
    %vm1967 = vweird.f32 %v1821
    %vm1968 = vweird.f32 %v1962
    %vm1969 = vmor %vm1967, %vm1968
    %v1970 = vsel %vm1969, %v1962, %v1966
    %v1971 = vand.u32 2147483647, %v1821
    %vm1972 = vcmp.eq.f32.partialorder %v1971, 8.507059e+37
    %v1973 = vand.u32 %v1821, 2147483648
    %v1974 = vor.u32 1.1754944e-38, %v1973
    %v1975 = vsel %vm1972, %v1974, %v1970
    %v1976 = vmul.f32 1.0, %v1975
    %v1977 = vrcp.pop %v1822
    %v1978 = vmul.f32 %v1822, %v1977
    %v1979 = vsub.f32 1.0, %v1978
    %v1980 = vmul.f32 %v1977, %v1979
    %v1981 = vadd.f32 %v1977, %v1980
    %vm1982 = vweird.f32 %v1822
    %vm1983 = vweird.f32 %v1977
    %vm1984 = vmor %vm1982, %vm1983
    %v1985 = vsel %vm1984, %v1977, %v1981
    %v1986 = vand.u32 2147483647, %v1822
    %vm1987 = vcmp.eq.f32.partialorder %v1986, 8.507059e+37
    %v1988 = vand.u32 %v1822, 2147483648
    %v1989 = vor.u32 1.1754944e-38, %v1988
    %v1990 = vsel %vm1987, %v1989, %v1985
    %v1991 = vmul.f32 1.0, %v1990
    %v1992 = vrcp.pop %v1823
    %v1993 = vmul.f32 %v1823, %v1992
    %v1994 = vsub.f32 1.0, %v1993
    %v1995 = vmul.f32 %v1992, %v1994
    %v1996 = vadd.f32 %v1992, %v1995
    %vm1997 = vweird.f32 %v1823
    %vm1998 = vweird.f32 %v1992
    %vm1999 = vmor %vm1997, %vm1998
    %v2000 = vsel %vm1999, %v1992, %v1996
    %v2001 = vand.u32 2147483647, %v1823
    %vm2002 = vcmp.eq.f32.partialorder %v2001, 8.507059e+37
    %v2003 = vand.u32 %v1823, 2147483648
    %v2004 = vor.u32 1.1754944e-38, %v2003
    %v2005 = vsel %vm2002, %v2004, %v2000
    %v2006 = vmul.f32 1.0, %v2005
    %v2007 = vrcp.pop %v1824
    %v2008 = vmul.f32 %v1824, %v2007
    %v2009 = vsub.f32 1.0, %v2008
    %v2010 = vmul.f32 %v2007, %v2009
    %v2011 = vadd.f32 %v2007, %v2010
    %vm2012 = vweird.f32 %v1824
    %vm2013 = vweird.f32 %v2007
    %vm2014 = vmor %vm2012, %vm2013
    %v2015 = vsel %vm2014, %v2007, %v2011
    %v2016 = vand.u32 2147483647, %v1824
    %vm2017 = vcmp.eq.f32.partialorder %v2016, 8.507059e+37
    %v2018 = vand.u32 %v1824, 2147483648
    %v2019 = vor.u32 1.1754944e-38, %v2018
    %v2020 = vsel %vm2017, %v2019, %v2015
    %v2021 = vmul.f32 1.0, %v2020
    %v2022 = vrcp.pop %v1825
    %v2023 = vmul.f32 %v1825, %v2022
    %v2024 = vsub.f32 1.0, %v2023
    %v2025 = vmul.f32 %v2022, %v2024
    %v2026 = vadd.f32 %v2022, %v2025
    %vm2027 = vweird.f32 %v1825
    %vm2028 = vweird.f32 %v2022
    %vm2029 = vmor %vm2027, %vm2028
    %v2030 = vsel %vm2029, %v2022, %v2026
    %v2031 = vand.u32 2147483647, %v1825
    %vm2032 = vcmp.eq.f32.partialorder %v2031, 8.507059e+37
    %v2033 = vand.u32 %v1825, 2147483648
    %v2034 = vor.u32 1.1754944e-38, %v2033
    %v2035 = vsel %vm2032, %v2034, %v2030
    %v2036 = vmul.f32 1.0, %v2035
    %v2037 = vrcp.pop %v1826
    %v2038 = vmul.f32 %v1826, %v2037
    %v2039 = vsub.f32 1.0, %v2038
    %v2040 = vmul.f32 %v2037, %v2039
    %v2041 = vadd.f32 %v2037, %v2040
    %vm2042 = vweird.f32 %v1826
    %vm2043 = vweird.f32 %v2037
    %vm2044 = vmor %vm2042, %vm2043
    %v2045 = vsel %vm2044, %v2037, %v2041
    %v2046 = vand.u32 2147483647, %v1826
    %vm2047 = vcmp.eq.f32.partialorder %v2046, 8.507059e+37
    %v2048 = vand.u32 %v1826, 2147483648
    %v2049 = vor.u32 1.1754944e-38, %v2048
    %v2050 = vsel %vm2047, %v2049, %v2045
    %v2051 = vmul.f32 1.0, %v2050
    %v2052 = vperm.slane %v1194, 0
    %v2053 = vmul.f32 %v1841, %v2052
    %v2054 = vmul.f32 %v1856, %v2052
    %v2055 = vmul.f32 %v1871, %v2052
    %v2056 = vmul.f32 %v1886, %v2052
    %v2057 = vmul.f32 %v1901, %v2052
    %v2058 = vmul.f32 %v1916, %v2052
    %v2059 = vmul.f32 %v1931, %v2052
    %v2060 = vmul.f32 %v1946, %v2052
    %v2061 = vmul.f32 %v1961, %v2052
    %v2062 = vmul.f32 %v1976, %v2052
    %v2063 = vmul.f32 %v1991, %v2052
    %v2064 = vmul.f32 %v2006, %v2052
    %v2065 = vmul.f32 %v2021, %v2052
    %v2066 = vmul.f32 %v2036, %v2052
    %v2067 = vmul.f32 %v2051, %v2052
    %v2068 = vperm.slane %v1195, 0
    %v2069 = vadd.f32 %v2053, %v2068
    %v2070 = vadd.f32 %v2054, %v2068
    %v2071 = vadd.f32 %v2055, %v2068
    %v2072 = vadd.f32 %v2056, %v2068
    %v2073 = vadd.f32 %v2057, %v2068
    %v2074 = vadd.f32 %v2058, %v2068
    %v2075 = vadd.f32 %v2059, %v2068
    %v2076 = vadd.f32 %v2060, %v2068
    %v2077 = vadd.f32 %v2061, %v2068
    %v2078 = vadd.f32 %v2062, %v2068
    %v2079 = vadd.f32 %v2063, %v2068
    %v2080 = vadd.f32 %v2064, %v2068
    %v2081 = vadd.f32 %v2065, %v2068
    %v2082 = vadd.f32 %v2066, %v2068
    %v2083 = vadd.f32 %v2067, %v2068
    %v2084 = vadd.f32 %v2069, 1.0
    %v2085 = vadd.f32 %v2070, 1.0
    %v2086 = vadd.f32 %v2071, 1.0
    %v2087 = vadd.f32 %v2072, 1.0
    %v2088 = vadd.f32 %v2073, 1.0
    %v2089 = vadd.f32 %v2074, 1.0
    %v2090 = vadd.f32 %v2075, 1.0
    %v2091 = vadd.f32 %v2076, 1.0
    %v2092 = vadd.f32 %v2077, 1.0
    %v2093 = vadd.f32 %v2078, 1.0
    %v2094 = vadd.f32 %v2079, 1.0
    %v2095 = vadd.f32 %v2080, 1.0
    %v2096 = vadd.f32 %v2081, 1.0
    %v2097 = vadd.f32 %v2082, 1.0
    %v2098 = vadd.f32 %v2083, 1.0
    %v2099 = vmul.f32 %v1339, %v2084
    %v2100 = vmul.f32 %v1340, %v2085
    %v2101 = vmul.f32 %v1341, %v2086
    %v2102 = vmul.f32 %v1342, %v2087
    %v2103 = vmul.f32 %v1343, %v2088
    %v2104 = vmul.f32 %v1344, %v2089
    %v2105 = vmul.f32 %v1345, %v2090
    %v2106 = vmul.f32 %v1346, %v2091
    %v2107 = vmul.f32 %v1347, %v2092
    %v2108 = vmul.f32 %v1348, %v2093
    %v2109 = vmul.f32 %v1349, %v2094
    %v2110 = vmul.f32 %v1350, %v2095
    %v2111 = vmul.f32 %v1351, %v2096
    %v2112 = vmul.f32 %v1352, %v2097
    %v2113 = vmul.f32 %v1353, %v2098
    %2114 = vst.msk [vmem:[%s9] sm:$0xff] %vm322, %v2099
    %2115 = vst.msk [vmem:[%s9 + $0x8] sm:$0xff] %vm322, %v2100
    %2116 = vst.msk [vmem:[%s9 + $0x10] sm:$0xff] %vm322, %v2101
    %2117 = vst.msk [vmem:[%s9 + $0x18] sm:$0xff] %vm322, %v2102
    %2118 = vst.msk [vmem:[%s9 + $0x20] sm:$0xff] %vm322, %v2103
    %2119 = vst.msk [vmem:[%s9 + $0x28] sm:$0xff] %vm322, %v2104
    %2120 = vst.msk [vmem:[%s9 + $0x30] sm:$0xff] %vm322, %v2105
    %2121 = vst.msk [vmem:[%s9 + $0x38] sm:$0xff] %vm322, %v2106
    %2122 = vst.msk [vmem:[%s9 + $0x40] sm:$0xff] %vm322, %v2107
    %2123 = vst.msk [vmem:[%s9 + $0x48] sm:$0xff] %vm322, %v2108
    %2124 = vst.msk [vmem:[%s9 + $0x50] sm:$0xff] %vm322, %v2109
    %2125 = vst.msk [vmem:[%s9 + $0x58] sm:$0xff] %vm322, %v2110
    %2126 = vst.msk [vmem:[%s9 + $0x60] sm:$0xff] %vm322, %v2111
    %2127 = vst.msk [vmem:[%s9 + $0x68] sm:$0xff] %vm322, %v2112
    %2128 = vst.msk [vmem:[%s9 + $0x70] sm:$0xff] %vm322, %v2113
    %2129 = vst.msk [vmem:[#allocation2] sm:$0xff] %vm322, %v1598
    %2130 = vst.msk [vmem:[#allocation2 + $0x8] sm:$0xff] %vm322, %v1599
    // Predicated region
    $region38: #{tpu_custom_call.1} parent=1 // pred_check
      _
    $region39: #{tpu_custom_call.1} parent=1 // pred_check_branch
      %2132 = sbr.rel (0) target = $region41
    $region40: #{tpu_custom_call.1} parent=1 // pred_region
      _
    $region41: #{tpu_custom_call.1} parent=1 // pred_fallthru
      _
    // Predicated region
    $region42: #{tpu_custom_call.1} parent=1 // pred_check
      _
    $region43: #{tpu_custom_call.1} parent=1 // pred_check_branch
      %2134 = sbr.rel (0) target = $region45
    $region44: #{tpu_custom_call.1} parent=1 // pred_region
      %2136 = vsyncadd [#allocation3], 0
      %s2137 = sshll.u32 [#allocation2], 4
      %s2138 = int_to_ptr.vmem [resolvable:$true] %s2137
      %s2139 = sshll.u32 %s10, 4
      %s2140 = int_to_ptr.hbm [resolvable:$true] %s2139
      %2145 = dma.vmem_to_hbm [thread:$0]  %s2138, 256, %s2140, [#allocation3], 128, 128, 8
    $region45: #{tpu_custom_call.1} parent=1 // pred_fallthru
      _
    // Predicated region
    $region46: #{tpu_custom_call.1} parent=1 // pred_check
      _
    $region47: #{tpu_custom_call.1} parent=1 // pred_check_branch
      %2147 = sbr.rel (0) target = $region49
    $region48: #{tpu_custom_call.1} parent=1 // pred_region
      _
    $region49: #{tpu_custom_call.1} parent=1 // pred_fallthru
      _
    // Predicated region
    $region50: #{tpu_custom_call.1} parent=1 // pred_check
      _
    $region51: #{tpu_custom_call.1} parent=1 // pred_check_branch
      %2149 = sbr.rel (0) target = $region53
    $region52: #{tpu_custom_call.1} parent=1 // pred_region
      %2151 = dma.done [#allocation3], 256
    $region53: #{tpu_custom_call.1} parent=1 // pred_fallthru
      _
    %2152 = vsyncpa [#allocation3], 1

</llo_original>
